<compile_context>
chip_gen: v5e
topology: v5e:2x2
jax: 0.10.0
libtpu: 0.0.40
codegen_flags: <defaults>
</compile_context>

<pallas_src>
import functools

import numpy as np
import jax
import jax.numpy as jnp
from jax.experimental import pallas as pl
from jax.experimental.pallas import tpu as pltpu

LANES = 128


def _round_up(x: int, m: int) -> int:
    return ((x + m - 1) // m) * m


def _embedder_kernel(x_ref, src_ref, freq_ref, sel_ref, o_ref, *, n_src):
    """x_ref: (tile, n_src) packed input rows (G batch rows per row).
    src/freq/sel: (1, d2) per-output-lane constants.
    o_ref: (tile, d2) packed cat-order output rows."""
    tile = x_ref.shape[0]
    d2 = o_ref.shape[1]

    # Keep all math in float32 (v5e VPU/EUP have no bf16 path).
    x = x_ref[...].astype(jnp.float32)
    src = jnp.broadcast_to(src_ref[...], (tile, d2))
    sel = jnp.broadcast_to(sel_ref[...], (tile, d2))

    # X[t, l] = x[t, src[l]] : small lane "gather" done as n_src broadcast+selects
    # (n_src is 3 or 6), exact copy for the identity lanes.
    X = jnp.zeros((tile, d2), jnp.float32)
    for c in range(n_src):
        xc = jnp.broadcast_to(x[:, c:c + 1], (tile, d2))
        X = jnp.where(src == c, xc, X)

    theta = X * freq_ref[...]                       # (1, d2) broadcasts over rows
    enc = jnp.where(sel == 1, jnp.sin(theta), jnp.cos(theta))
    out = jnp.where(sel == 0, X, enc)               # identity lanes pass x exactly
    o_ref[...] = out.astype(o_ref.dtype)


def embedder(x, n_freqs, log_space=False, *, out_dtype=None,
             vmem_budget_bytes=24 * 1024 * 1024):
    """Pallas equivalent of Embedder(d_input=x.shape[-1], n_freqs, log_space)(x)."""
    d_input = x.shape[-1]
    batch_shape = x.shape[:-1]
    n_funcs = 1 + 2 * n_freqs
    d_out = d_input * n_funcs
    out_dtype = x.dtype if out_dtype is None else jnp.dtype(out_dtype)

    N = int(np.prod(batch_shape)) if batch_shape else 1
    x2 = jnp.reshape(x, (N, d_input))

    # Frequencies, matching torch.linspace semantics.
    if n_freqs > 0:
        if log_space:
            freqs = 2.0 ** np.linspace(0.0, n_freqs - 1, n_freqs)
        else:
            freqs = np.linspace(2.0 ** 0.0, 2.0 ** (n_freqs - 1), n_freqs)
        freqs = freqs.astype(np.float64)
    else:
        freqs = np.zeros((1,), np.float64)

    # Pack G batch rows per lane-row so output rows are ~full 128-lane vregs
    # (G=2, d_out=63 -> 126/128).  Free row-major reshape, no pad, no slice.
    G = 2 if (N % 2 == 0 and N > 0) else 1
    NG = max(N // G, 1)
    n_src = G * d_input
    d2 = G * d_out
    x_packed = jnp.reshape(x2, (NG, n_src))

    # Per-output-lane constants (host-side numpy, baked once).
    l = np.arange(d2)
    p = l % d_out                              # position within one output row
    m = l // d_out                             # which packed batch row (0..G-1)
    c = p % d_input                            # input channel
    src_row = (m * d_input + c).astype(np.int32)
    g = np.maximum(p - d_input, 0) // d_input  # band*2 + (0 sin / 1 cos)
    j = np.minimum(g // 2, max(n_freqs - 1, 0))
    is_id = p < d_input
    is_sin = (g % 2) == 0
    sel_row = np.where(is_id, 0, np.where(is_sin, 1, 2)).astype(np.int32)
    freq_row = np.where(is_id, 0.0, freqs[j]).astype(np.float32)

    src_arr = jnp.asarray(src_row.reshape(1, d2))
    freq_arr = jnp.asarray(freq_row.reshape(1, d2))
    sel_arr = jnp.asarray(sel_row.reshape(1, d2))

    itemsize_in = jnp.dtype(x.dtype).itemsize
    itemsize_out = jnp.dtype(out_dtype).itemsize

    # Row tile from a VMEM budget (in + out blocks, double-buffered; lane dims
    # are padded to 128 inside VMEM, so budget with that padding, f32 upper bound).
    per_row_bytes = (_round_up(n_src, LANES) + _round_up(d2, LANES)) * 4
    sub = 8 if itemsize_out >= 4 else (16 if itemsize_out == 2 else 32)
    tile = (vmem_budget_bytes // (2 * per_row_bytes)) // sub * sub
    tile = max(sub, min(tile, _round_up(NG, sub)))

    cost = pl.CostEstimate(
        flops=int(16 * N * d_out),
        transcendentals=int(2 * N * d_out),
        bytes_accessed=int(N * d_input * itemsize_in + N * d_out * itemsize_out),
    )

    kernel = functools.partial(_embedder_kernel, n_src=n_src)
    const_spec = pl.BlockSpec((1, d2), lambda i: (0, 0))

    out2 = pl.pallas_call(
        kernel,
        out_shape=jax.ShapeDtypeStruct((NG, d2), out_dtype),
        grid=(pl.cdiv(NG, tile),),
        in_specs=[pl.BlockSpec((tile, n_src), lambda i: (i, 0)),
                  const_spec, const_spec, const_spec],
        out_specs=pl.BlockSpec((tile, d2), lambda i: (i, 0)),
        compiler_params=pltpu.CompilerParams(
            dimension_semantics=("parallel",),   # shards row tiles across v7x TCs
        ),
        cost_estimate=cost,
    )(x_packed, src_arr, freq_arr, sel_arr)

    # (NG, G*d_out) -> (..., d_out) is a free row-major reshape: the kernel
    # already produced torch.cat feature order, no transpose / slice needed.
    return jnp.reshape(out2, tuple(batch_shape) + (d_out,))


# ----------------------------- pure-JAX reference ----------------------------
def embedder_ref(x, n_freqs, log_space=False):
    if log_space:
        freqs = 2.0 ** np.linspace(0.0, n_freqs - 1, n_freqs)
    else:
        freqs = np.linspace(2.0 ** 0.0, 2.0 ** (n_freqs - 1), n_freqs)
    outs = [x]
    for f in freqs.astype(np.float32):
        outs.append(jnp.sin(float(f) * x))
        outs.append(jnp.cos(float(f) * x))
    return jnp.concatenate(outs, axis=-1)


if __name__ == "__main__":
    key = jax.random.PRNGKey(0)
    d_input, n_freqs = 3, 10
    # NeRF-style normalized coordinates in [-1, 1]
    x = jax.random.uniform(key, (2, 64, d_input), dtype=jnp.float32,
                           minval=-1.0, maxval=1.0)

    for log_space in (False, True):
        out = jax.block_until_ready(embedder(x, n_freqs, log_space=log_space))
        ref = embedder_ref(x, n_freqs, log_space=log_space)
        assert out.shape == (2, 64, d_input * (1 + 2 * n_freqs)), out.shape
        # Exact per-band f32 sin/cos (no recurrence); slack only for backend
        # sin/cos implementation differences at large arguments (f up to 512).
        np.testing.assert_allclose(np.asarray(out), np.asarray(ref),
                                   rtol=0.0, atol=2e-4)

    print("KERNEL_OK")
</pallas_src>

<mosaic_0001>
module attributes {stable_mosaic.version = 11 : i64} {
  func.func @_embedder_kernel(%arg0: i32, %arg1: memref<64x6xf32, #tpu.memory_space<vmem>>, %arg2: memref<1x126xi32, #tpu.memory_space<vmem>>, %arg3: memref<1x126xf32, #tpu.memory_space<vmem>>, %arg4: memref<1x126xi32, #tpu.memory_space<vmem>>, %arg5: memref<64x126xf32, #tpu.memory_space<vmem>>) attributes {dimension_semantics = [#tpu.dimension_semantics<parallel>], iteration_bounds = array<i64: 1>, scalar_prefetch = 0 : i64, scratch_operands = 0 : i64, tpu.core_type = #tpu.core_type<tc>, window_params = [{transform_indices = @transform_0, window_bounds = array<i64: 64, 6>}, {pipeline_mode = #tpu.pipeline_mode<synchronous>, transform_indices = @transform_1, window_bounds = array<i64: 1, 126>}, {pipeline_mode = #tpu.pipeline_mode<synchronous>, transform_indices = @transform_2, window_bounds = array<i64: 1, 126>}, {pipeline_mode = #tpu.pipeline_mode<synchronous>, transform_indices = @transform_3, window_bounds = array<i64: 1, 126>}, {transform_indices = @transform_4, window_bounds = array<i64: 64, 126>}]} {
    %c0 = arith.constant 0 : index
    %c0_0 = arith.constant 0 : index
    %0 = vector.load %arg1[%c0, %c0_0] : memref<64x6xf32, #tpu.memory_space<vmem>>, vector<64x6xf32>
    %c0_1 = arith.constant 0 : index
    %c0_2 = arith.constant 0 : index
    %1 = vector.load %arg2[%c0_1, %c0_2] : memref<1x126xi32, #tpu.memory_space<vmem>>, vector<1x126xi32>
    %2 = vector.shape_cast %1 : vector<1x126xi32> to vector<1x126xi32>
    %3 = vector.broadcast %2 : vector<1x126xi32> to vector<64x126xi32>
    %c0_3 = arith.constant 0 : index
    %c0_4 = arith.constant 0 : index
    %4 = vector.load %arg4[%c0_3, %c0_4] : memref<1x126xi32, #tpu.memory_space<vmem>>, vector<1x126xi32>
    %5 = vector.shape_cast %4 : vector<1x126xi32> to vector<1x126xi32>
    %6 = vector.broadcast %5 : vector<1x126xi32> to vector<64x126xi32>
    %cst = arith.constant 0.000000e+00 : f32
    %7 = vector.broadcast %cst : f32 to vector<64x126xf32>
    %8 = vector.extract_strided_slice %0 {offsets = [0, 0], sizes = [64, 1], strides = [1, 1]} : vector<64x6xf32> to vector<64x1xf32>
    %9 = vector.shape_cast %8 : vector<64x1xf32> to vector<64x1xf32>
    %10 = vector.broadcast %9 : vector<64x1xf32> to vector<64x126xf32>
    %c0_i32 = arith.constant 0 : i32
    %11 = vector.broadcast %c0_i32 : i32 to vector<64x126xi32>
    %12 = arith.cmpi eq, %3, %11 : vector<64x126xi32>
    %13 = arith.select %12, %10, %7 : vector<64x126xi1>, vector<64x126xf32>
    %14 = vector.extract_strided_slice %0 {offsets = [0, 1], sizes = [64, 1], strides = [1, 1]} : vector<64x6xf32> to vector<64x1xf32>
    %15 = vector.shape_cast %14 : vector<64x1xf32> to vector<64x1xf32>
    %16 = vector.broadcast %15 : vector<64x1xf32> to vector<64x126xf32>
    %c1_i32 = arith.constant 1 : i32
    %17 = vector.broadcast %c1_i32 : i32 to vector<64x126xi32>
    %18 = arith.cmpi eq, %3, %17 : vector<64x126xi32>
    %19 = arith.select %18, %16, %13 : vector<64x126xi1>, vector<64x126xf32>
    %20 = vector.extract_strided_slice %0 {offsets = [0, 2], sizes = [64, 1], strides = [1, 1]} : vector<64x6xf32> to vector<64x1xf32>
    %21 = vector.shape_cast %20 : vector<64x1xf32> to vector<64x1xf32>
    %22 = vector.broadcast %21 : vector<64x1xf32> to vector<64x126xf32>
    %c2_i32 = arith.constant 2 : i32
    %23 = vector.broadcast %c2_i32 : i32 to vector<64x126xi32>
    %24 = arith.cmpi eq, %3, %23 : vector<64x126xi32>
    %25 = arith.select %24, %22, %19 : vector<64x126xi1>, vector<64x126xf32>
    %26 = vector.extract_strided_slice %0 {offsets = [0, 3], sizes = [64, 1], strides = [1, 1]} : vector<64x6xf32> to vector<64x1xf32>
    %27 = vector.shape_cast %26 : vector<64x1xf32> to vector<64x1xf32>
    %28 = vector.broadcast %27 : vector<64x1xf32> to vector<64x126xf32>
    %c3_i32 = arith.constant 3 : i32
    %29 = vector.broadcast %c3_i32 : i32 to vector<64x126xi32>
    %30 = arith.cmpi eq, %3, %29 : vector<64x126xi32>
    %31 = arith.select %30, %28, %25 : vector<64x126xi1>, vector<64x126xf32>
    %32 = vector.extract_strided_slice %0 {offsets = [0, 4], sizes = [64, 1], strides = [1, 1]} : vector<64x6xf32> to vector<64x1xf32>
    %33 = vector.shape_cast %32 : vector<64x1xf32> to vector<64x1xf32>
    %34 = vector.broadcast %33 : vector<64x1xf32> to vector<64x126xf32>
    %c4_i32 = arith.constant 4 : i32
    %35 = vector.broadcast %c4_i32 : i32 to vector<64x126xi32>
    %36 = arith.cmpi eq, %3, %35 : vector<64x126xi32>
    %37 = arith.select %36, %34, %31 : vector<64x126xi1>, vector<64x126xf32>
    %38 = vector.extract_strided_slice %0 {offsets = [0, 5], sizes = [64, 1], strides = [1, 1]} : vector<64x6xf32> to vector<64x1xf32>
    %39 = vector.shape_cast %38 : vector<64x1xf32> to vector<64x1xf32>
    %40 = vector.broadcast %39 : vector<64x1xf32> to vector<64x126xf32>
    %c5_i32 = arith.constant 5 : i32
    %41 = vector.broadcast %c5_i32 : i32 to vector<64x126xi32>
    %42 = arith.cmpi eq, %3, %41 : vector<64x126xi32>
    %43 = arith.select %42, %40, %37 : vector<64x126xi1>, vector<64x126xf32>
    %c0_5 = arith.constant 0 : index
    %c0_6 = arith.constant 0 : index
    %44 = vector.load %arg3[%c0_5, %c0_6] : memref<1x126xf32, #tpu.memory_space<vmem>>, vector<1x126xf32>
    %45 = vector.broadcast %44 : vector<1x126xf32> to vector<64x126xf32>
    %46 = arith.mulf %43, %45 : vector<64x126xf32>
    %c1_i32_7 = arith.constant 1 : i32
    %47 = vector.broadcast %c1_i32_7 : i32 to vector<64x126xi32>
    %48 = arith.cmpi eq, %6, %47 : vector<64x126xi32>
    %49 = math.sin %46 : vector<64x126xf32>
    %50 = math.cos %46 : vector<64x126xf32>
    %51 = arith.select %48, %49, %50 : vector<64x126xi1>, vector<64x126xf32>
    %c0_i32_8 = arith.constant 0 : i32
    %52 = vector.broadcast %c0_i32_8 : i32 to vector<64x126xi32>
    %53 = arith.cmpi eq, %6, %52 : vector<64x126xi32>
    %54 = arith.select %53, %43, %51 : vector<64x126xi1>, vector<64x126xf32>
    %c0_9 = arith.constant 0 : index
    %c0_10 = arith.constant 0 : index
    %55 = vector.load %arg5[%c0_9, %c0_10] : memref<64x126xf32, #tpu.memory_space<vmem>>, vector<64x126xf32>
    tpu.vector_store %arg5[%c0_9, %c0_10], %54 {strides = array<i32>} : memref<64x126xf32, #tpu.memory_space<vmem>>, vector<64x126xf32>,
    return
  }
  func.func @transform_0(%arg0: i32) -> (i32, i32) {
    %c0_i32 = arith.constant 0 : i32
    %c0_i32_0 = arith.constant 0 : i32
    return %arg0, %c0_i32 : i32, i32
  }
  func.func @transform_1(%arg0: i32) -> (i32, i32) {
    %c0_i32 = arith.constant 0 : i32
    %c0_i32_0 = arith.constant 0 : i32
    %c0_i32_1 = arith.constant 0 : i32
    return %c0_i32, %c0_i32_0 : i32, i32
  }
  func.func @transform_2(%arg0: i32) -> (i32, i32) {
    %c0_i32 = arith.constant 0 : i32
    %c0_i32_0 = arith.constant 0 : i32
    %c0_i32_1 = arith.constant 0 : i32
    return %c0_i32, %c0_i32_0 : i32, i32
  }
  func.func @transform_3(%arg0: i32) -> (i32, i32) {
    %c0_i32 = arith.constant 0 : i32
    %c0_i32_0 = arith.constant 0 : i32
    %c0_i32_1 = arith.constant 0 : i32
    return %c0_i32, %c0_i32_0 : i32, i32
  }
  func.func @transform_4(%arg0: i32) -> (i32, i32) {
    %c0_i32 = arith.constant 0 : i32
    %c0_i32_0 = arith.constant 0 : i32
    return %arg0, %c0_i32 : i32, i32
  }
}

</mosaic_0001>

<llo_original>
// kernel: tpu_custom_call.1
$region0: #{tpu_custom_call.1}
  #allocation0 [shape = 'u32[]', space=smem, size = 0x4, offset = 0x4, fixed_abs, tag = 'smem constant byte address 0x4 - core index']
  #allocation1 [shape = 'u32[72,128]{1,0:T(1,128)}', space=vmem, size = 0x9000, scoped, tag = 'internal scratch']
  %s0 = inlined_call_operand.vmem [shape: f32[64,6], index: 0, kind: input, shape index: {}]
  %s1 = inlined_call_operand.vmem [shape: s32[1,126], index: 1, kind: input, shape index: {}]
  %s2 = inlined_call_operand.vmem [shape: f32[1,126], index: 2, kind: input, shape index: {}]
  %s3 = inlined_call_operand.vmem [shape: s32[1,126], index: 3, kind: input, shape index: {}]
  %s4 = inlined_call_operand.hbm [shape: f32[64,126], index: 4, kind: output, shape index: {}]
  %s5 = sld [smem:[#allocation0]]
  $region26: #{tpu_custom_call.1} parent=0
    _
  %s7 = ssub.s32 1, %s5
  %s8 = scalar_select 0, %s7, %s5
  $region1: #{tpu_custom_call.1} parent=0
    #allocation2 [shape = 'u8[32768]{0}', space=vmem, size = 0x8000, scoped, tag = 'output window, operand 0, single buffered']
    #allocation3 [shape = 's32[1]{0}', space=sflag, size = 0x4, scoped, tag = 'scoped memory for tpu_custom_call.1']
    %9 = vsyncpa [#allocation3], 0
    // Predicated region
    $region2: #{tpu_custom_call.1} parent=1 // pred_check
      _
    $region3: #{tpu_custom_call.1} parent=1 // pred_check_branch
      %11 = sbr.rel (0) target = $region5
    $region4: #{tpu_custom_call.1} parent=1 // pred_region
      _
    $region5: #{tpu_custom_call.1} parent=1 // pred_fallthru
      _
    // Predicated region
    $region6: #{tpu_custom_call.1} parent=1 // pred_check
      _
    $region7: #{tpu_custom_call.1} parent=1 // pred_check_branch
      %13 = sbr.rel (0) target = $region9
    $region8: #{tpu_custom_call.1} parent=1 // pred_region
      _
    $region9: #{tpu_custom_call.1} parent=1 // pred_fallthru
      _
    // Predicated region
    $region10: #{tpu_custom_call.1} parent=1 // pred_check
      _
    $region11: #{tpu_custom_call.1} parent=1 // pred_check_branch
      %15 = sbr.rel (0) target = $region13
    $region12: #{tpu_custom_call.1} parent=1 // pred_region
      _
    $region13: #{tpu_custom_call.1} parent=1 // pred_fallthru
      _
    // Predicated region
    $region14: #{tpu_custom_call.1} parent=1 // pred_check
      _
    $region15: #{tpu_custom_call.1} parent=1 // pred_check_branch
      %17 = sbr.rel (0) target = $region17
    $region16: #{tpu_custom_call.1} parent=1 // pred_region
      _
    $region17: #{tpu_custom_call.1} parent=1 // pred_fallthru
      _
    %v18 = vld [vmem:[%s0] sm:$0xff]
    %v19 = vld [vmem:[%s0 + $0x8] sm:$0xff]
    %v20 = vld [vmem:[%s0 + $0x10] sm:$0xff]
    %v21 = vld [vmem:[%s0 + $0x18] sm:$0xff]
    %v22 = vld [vmem:[%s0 + $0x20] sm:$0xff]
    %v23 = vld [vmem:[%s0 + $0x28] sm:$0xff]
    %v24 = vld [vmem:[%s0 + $0x30] sm:$0xff]
    %v25 = vld [vmem:[%s0 + $0x38] sm:$0xff]
    %v26 = vld [vmem:[%s1] sm:$0x1]
    %v27 = vperm.slane %v26, 0
    %v28 = vld [vmem:[%s3] sm:$0x1]
    %v29 = vperm.slane %v28, 0
    %31 = vset.pattern.permute.xlu0 0
    %32 = vperm.xlu0 %31, %v18
    %v33 = vpop.permute.xlu0 %32
    %36 = vset.pattern.permute.xlu0 0
    %37 = vperm.xlu0 %36, %v19
    %v38 = vpop.permute.xlu0 %37
    %41 = vset.pattern.permute.xlu0 0
    %42 = vperm.xlu0 %41, %v20
    %v43 = vpop.permute.xlu0 %42
    %46 = vset.pattern.permute.xlu0 0
    %47 = vperm.xlu0 %46, %v21
    %v48 = vpop.permute.xlu0 %47
    %51 = vset.pattern.permute.xlu0 0
    %52 = vperm.xlu0 %51, %v22
    %v53 = vpop.permute.xlu0 %52
    %56 = vset.pattern.permute.xlu0 0
    %57 = vperm.xlu0 %56, %v23
    %v58 = vpop.permute.xlu0 %57
    %61 = vset.pattern.permute.xlu0 0
    %62 = vperm.xlu0 %61, %v24
    %v63 = vpop.permute.xlu0 %62
    %66 = vset.pattern.permute.xlu0 0
    %67 = vperm.xlu0 %66, %v25
    %v68 = vpop.permute.xlu0 %67
    %vm70 = vcmp.eq.s32.totalorder %v27, 0
    %v71 = vsel %vm70, %v33, 0.0
    %v72 = vsel %vm70, %v38, 0.0
    %v73 = vsel %vm70, %v43, 0.0
    %v74 = vsel %vm70, %v48, 0.0
    %v75 = vsel %vm70, %v53, 0.0
    %v76 = vsel %vm70, %v58, 0.0
    %v77 = vsel %vm70, %v63, 0.0
    %v78 = vsel %vm70, %v68, 0.0
    %79 = vset.pattern.permute.xlu0 1
    %80 = vperm.xlu0 %79, %v18
    %v81 = vpop.permute.xlu0 %80
    %83 = vset.pattern.permute.xlu0 1
    %84 = vperm.xlu0 %83, %v19
    %v85 = vpop.permute.xlu0 %84
    %87 = vset.pattern.permute.xlu0 1
    %88 = vperm.xlu0 %87, %v20
    %v89 = vpop.permute.xlu0 %88
    %91 = vset.pattern.permute.xlu0 1
    %92 = vperm.xlu0 %91, %v21
    %v93 = vpop.permute.xlu0 %92
    %95 = vset.pattern.permute.xlu0 1
    %96 = vperm.xlu0 %95, %v22
    %v97 = vpop.permute.xlu0 %96
    %99 = vset.pattern.permute.xlu0 1
    %100 = vperm.xlu0 %99, %v23
    %v101 = vpop.permute.xlu0 %100
    %103 = vset.pattern.permute.xlu0 1
    %104 = vperm.xlu0 %103, %v24
    %v105 = vpop.permute.xlu0 %104
    %107 = vset.pattern.permute.xlu0 1
    %108 = vperm.xlu0 %107, %v25
    %v109 = vpop.permute.xlu0 %108
    %vm111 = vcmp.eq.s32.totalorder %v27, 1
    %v112 = vsel %vm111, %v81, %v71
    %v113 = vsel %vm111, %v85, %v72
    %v114 = vsel %vm111, %v89, %v73
    %v115 = vsel %vm111, %v93, %v74
    %v116 = vsel %vm111, %v97, %v75
    %v117 = vsel %vm111, %v101, %v76
    %v118 = vsel %vm111, %v105, %v77
    %v119 = vsel %vm111, %v109, %v78
    %120 = vset.pattern.permute.xlu0 2
    %121 = vperm.xlu0 %120, %v18
    %v122 = vpop.permute.xlu0 %121
    %124 = vset.pattern.permute.xlu0 2
    %125 = vperm.xlu0 %124, %v19
    %v126 = vpop.permute.xlu0 %125
    %128 = vset.pattern.permute.xlu0 2
    %129 = vperm.xlu0 %128, %v20
    %v130 = vpop.permute.xlu0 %129
    %132 = vset.pattern.permute.xlu0 2
    %133 = vperm.xlu0 %132, %v21
    %v134 = vpop.permute.xlu0 %133
    %136 = vset.pattern.permute.xlu0 2
    %137 = vperm.xlu0 %136, %v22
    %v138 = vpop.permute.xlu0 %137
    %140 = vset.pattern.permute.xlu0 2
    %141 = vperm.xlu0 %140, %v23
    %v142 = vpop.permute.xlu0 %141
    %144 = vset.pattern.permute.xlu0 2
    %145 = vperm.xlu0 %144, %v24
    %v146 = vpop.permute.xlu0 %145
    %148 = vset.pattern.permute.xlu0 2
    %149 = vperm.xlu0 %148, %v25
    %v150 = vpop.permute.xlu0 %149
    %vm152 = vcmp.eq.s32.totalorder %v27, 2
    %v153 = vsel %vm152, %v122, %v112
    %v154 = vsel %vm152, %v126, %v113
    %v155 = vsel %vm152, %v130, %v114
    %v156 = vsel %vm152, %v134, %v115
    %v157 = vsel %vm152, %v138, %v116
    %v158 = vsel %vm152, %v142, %v117
    %v159 = vsel %vm152, %v146, %v118
    %v160 = vsel %vm152, %v150, %v119
    %161 = vset.pattern.permute.xlu0 3
    %162 = vperm.xlu0 %161, %v18
    %v163 = vpop.permute.xlu0 %162
    %165 = vset.pattern.permute.xlu0 3
    %166 = vperm.xlu0 %165, %v19
    %v167 = vpop.permute.xlu0 %166
    %169 = vset.pattern.permute.xlu0 3
    %170 = vperm.xlu0 %169, %v20
    %v171 = vpop.permute.xlu0 %170
    %173 = vset.pattern.permute.xlu0 3
    %174 = vperm.xlu0 %173, %v21
    %v175 = vpop.permute.xlu0 %174
    %177 = vset.pattern.permute.xlu0 3
    %178 = vperm.xlu0 %177, %v22
    %v179 = vpop.permute.xlu0 %178
    %181 = vset.pattern.permute.xlu0 3
    %182 = vperm.xlu0 %181, %v23
    %v183 = vpop.permute.xlu0 %182
    %185 = vset.pattern.permute.xlu0 3
    %186 = vperm.xlu0 %185, %v24
    %v187 = vpop.permute.xlu0 %186
    %189 = vset.pattern.permute.xlu0 3
    %190 = vperm.xlu0 %189, %v25
    %v191 = vpop.permute.xlu0 %190
    %vm193 = vcmp.eq.s32.totalorder %v27, 3
    %v194 = vsel %vm193, %v163, %v153
    %v195 = vsel %vm193, %v167, %v154
    %v196 = vsel %vm193, %v171, %v155
    %v197 = vsel %vm193, %v175, %v156
    %v198 = vsel %vm193, %v179, %v157
    %v199 = vsel %vm193, %v183, %v158
    %v200 = vsel %vm193, %v187, %v159
    %v201 = vsel %vm193, %v191, %v160
    %202 = vset.pattern.permute.xlu0 4
    %203 = vperm.xlu0 %202, %v18
    %v204 = vpop.permute.xlu0 %203
    %206 = vset.pattern.permute.xlu0 4
    %207 = vperm.xlu0 %206, %v19
    %v208 = vpop.permute.xlu0 %207
    %210 = vset.pattern.permute.xlu0 4
    %211 = vperm.xlu0 %210, %v20
    %v212 = vpop.permute.xlu0 %211
    %214 = vset.pattern.permute.xlu0 4
    %215 = vperm.xlu0 %214, %v21
    %v216 = vpop.permute.xlu0 %215
    %218 = vset.pattern.permute.xlu0 4
    %219 = vperm.xlu0 %218, %v22
    %v220 = vpop.permute.xlu0 %219
    %222 = vset.pattern.permute.xlu0 4
    %223 = vperm.xlu0 %222, %v23
    %v224 = vpop.permute.xlu0 %223
    %226 = vset.pattern.permute.xlu0 4
    %227 = vperm.xlu0 %226, %v24
    %v228 = vpop.permute.xlu0 %227
    %230 = vset.pattern.permute.xlu0 4
    %231 = vperm.xlu0 %230, %v25
    %v232 = vpop.permute.xlu0 %231
    %vm234 = vcmp.eq.s32.totalorder %v27, 4
    %v235 = vsel %vm234, %v204, %v194
    %v236 = vsel %vm234, %v208, %v195
    %v237 = vsel %vm234, %v212, %v196
    %v238 = vsel %vm234, %v216, %v197
    %v239 = vsel %vm234, %v220, %v198
    %v240 = vsel %vm234, %v224, %v199
    %v241 = vsel %vm234, %v228, %v200
    %v242 = vsel %vm234, %v232, %v201
    %243 = vset.pattern.permute.xlu0 5
    %244 = vperm.xlu0 %243, %v18
    %v245 = vpop.permute.xlu0 %244
    %247 = vset.pattern.permute.xlu0 5
    %248 = vperm.xlu0 %247, %v19
    %v249 = vpop.permute.xlu0 %248
    %251 = vset.pattern.permute.xlu0 5
    %252 = vperm.xlu0 %251, %v20
    %v253 = vpop.permute.xlu0 %252
    %255 = vset.pattern.permute.xlu0 5
    %256 = vperm.xlu0 %255, %v21
    %v257 = vpop.permute.xlu0 %256
    %259 = vset.pattern.permute.xlu0 5
    %260 = vperm.xlu0 %259, %v22
    %v261 = vpop.permute.xlu0 %260
    %263 = vset.pattern.permute.xlu0 5
    %264 = vperm.xlu0 %263, %v23
    %v265 = vpop.permute.xlu0 %264
    %267 = vset.pattern.permute.xlu0 5
    %268 = vperm.xlu0 %267, %v24
    %v269 = vpop.permute.xlu0 %268
    %271 = vset.pattern.permute.xlu0 5
    %272 = vperm.xlu0 %271, %v25
    %v273 = vpop.permute.xlu0 %272
    %vm275 = vcmp.eq.s32.totalorder %v27, 5
    %v276 = vsel %vm275, %v245, %v235
    %v277 = vsel %vm275, %v249, %v236
    %v278 = vsel %vm275, %v253, %v237
    %v279 = vsel %vm275, %v257, %v238
    %v280 = vsel %vm275, %v261, %v239
    %v281 = vsel %vm275, %v265, %v240
    %v282 = vsel %vm275, %v269, %v241
    %v283 = vsel %vm275, %v273, %v242
    %v284 = vld [vmem:[%s2] sm:$0x1]
    %v286 = vperm.slane %v284, 0
    %v288 = vmul.f32 %v276, %v286
    %v289 = vmul.f32 %v277, %v286
    %v290 = vmul.f32 %v278, %v286
    %v291 = vmul.f32 %v279, %v286
    %v292 = vmul.f32 %v280, %v286
    %v293 = vmul.f32 %v281, %v286
    %v294 = vmul.f32 %v282, %v286
    %v295 = vmul.f32 %v283, %v286
    %vm296 = vcmp.eq.s32.totalorder %v29, 1
    %v297 = vand.u32 2147483647, %v288
    %vm298 = vcmp.le.f32.partialorder %v297, 0.7853982
    %vm299 = vcmp.lt.s32.totalorder %v288, 0
    %v300 = vand.u32 %v288, 2139095040
    %v301 = vshrl.u32 %v300, 23
    %v302 = vsub.s32 %v301, 127
    %v303 = vand.u32 2147483647, %v288
    %v304 = vand.u32 %v303, 8388607
    %v305 = vor.u32 %v304, 8388608
    %v306 = vsub.s32 0, %v305
    %v307 = vadd.s32 %v302, 1
    %vm308 = vcmp.gt.s32.totalorder %v307, 0
    %v309 = vsel %vm308, %v307, 0
    %v310 = vshrl.u32 %v309, 5
    %v311 = vand.u32 %v309, 31
    %v312 = vsub.s32 32, %v311
    %v313 = vshrl.u32 683565275, %v312
    %v314 = vshll.u32 683565275, %v311
    %v315 = vshrl.u32 2475754826, %v312
    %v316 = vor.u32 %v314, %v315
    %v317 = vshll.u32 2475754826, %v311
    %v318 = vshrl.u32 2131351028, %v312
    %v319 = vor.u32 %v317, %v318
    %v320 = vshll.u32 2131351028, %v311
    %v321 = vshrl.u32 2102212464, %v312
    %v322 = vor.u32 %v320, %v321
    %v323 = vshll.u32 2102212464, %v311
    %v324 = vshrl.u32 920167782, %v312
    %v325 = vor.u32 %v323, %v324
    %v326 = vshll.u32 920167782, %v311
    %v327 = vshrl.u32 1326507024, %v312
    %v328 = vor.u32 %v326, %v327
    %vm329 = vcmp.lt.s32.totalorder %v310, 1
    %vm330 = vcmp.lt.s32.totalorder %v310, 2
    %vm331 = vcmp.lt.s32.totalorder %v310, 3
    %vm332 = vcmp.lt.s32.totalorder %v310, 4
    %v333 = vsel %vm329, %v313, %v316
    %v334 = vsel %vm332, %v322, 2102212464
    %v335 = vsel %vm331, %v319, %v334
    %v336 = vsel %vm330, %v333, %v335
    %v337 = vsel %vm329, %v316, %v319
    %v338 = vsel %vm332, %v325, 920167782
    %v339 = vsel %vm331, %v322, %v338
    %v340 = vsel %vm330, %v337, %v339
    %v341 = vsel %vm329, %v319, %v322
    %v342 = vsel %vm332, %v328, 1326507024
    %v343 = vsel %vm331, %v325, %v342
    %v344 = vsel %vm330, %v341, %v343
    %v345 = vshll.u32 %v305, 8
    %v346 = vand.u32 %v345, 65535
    %v347 = vshrl.u32 %v345, 16
    %v348 = vand.u32 %v344, 65535
    %v349 = vshrl.u32 %v344, 16
    %v350 = vmul.u32 %v346, %v348
    %v351 = vmul.u32 %v346, %v349
    %v352 = vmul.u32 %v347, %v348
    %v353 = vmul.u32 %v347, %v349
    %v354 = vshll.u32 %v351, 16
    %v355 = vshrl.u32 %v351, 16
    %v356 = vshll.u32 %v352, 16
    %v357 = vshrl.u32 %v352, 16
    %vm358 = vc.u32 %v350, %v354
    %v359 = vsel %vm358, 1, 0
    %v360 = vadd.s32 %v350, %v354
    %v361 = vadd.s32 %v353, %v359
    %vm362 = vc.u32 %v360, %v356
    %v363 = vsel %vm362, 1, 0
    %v364 = vadd.s32 %v360, %v356
    %v365 = vadd.s32 %v361, %v363
    %v366 = vadd.s32 %v365, %v355
    %v367 = vadd.s32 %v366, %v357
    %v368 = vand.u32 %v345, 65535
    %v369 = vshrl.u32 %v345, 16
    %v370 = vand.u32 %v340, 65535
    %v371 = vshrl.u32 %v340, 16
    %v372 = vmul.u32 %v368, %v370
    %v373 = vmul.u32 %v368, %v371
    %v374 = vmul.u32 %v369, %v370
    %v375 = vmul.u32 %v369, %v371
    %v376 = vshll.u32 %v373, 16
    %v377 = vshrl.u32 %v373, 16
    %v378 = vshll.u32 %v374, 16
    %v379 = vshrl.u32 %v374, 16
    %vm380 = vc.u32 %v372, %v376
    %v381 = vsel %vm380, 1, 0
    %v382 = vadd.s32 %v372, %v376
    %v383 = vadd.s32 %v375, %v381
    %vm384 = vc.u32 %v382, %v378
    %v385 = vsel %vm384, 1, 0
    %v386 = vadd.s32 %v382, %v378
    %v387 = vadd.s32 %v383, %v385
    %v388 = vadd.s32 %v387, %v377
    %v389 = vadd.s32 %v388, %v379
    %v390 = vmul.u32 %v345, %v336
    %v391 = vadd.s32 %v367, %v386
    %vm392 = vc.u32 %v367, %v386
    %v393 = vadd.s32 %v389, 1
    %v394 = vsel %vm392, %v393, %v389
    %v395 = vadd.s32 %v390, %v394
    %v396 = vadd.s32 %v395, 536870912
    %v397 = vshrl.u32 %v396, 30
    %v398 = vshll.u32 %v397, 30
    %v399 = vsub.s32 %v395, %v398
    %vm400 = vcmp.lt.s32.totalorder %v399, 0
    %v401 = vsub.s32 0, %v399
    %v402 = vsel %vm400, %v401, %v399
    %v403 = vclz %v402
    %v404 = vsub.s32 %v403, 2
    %vm405 = vcmp.gt.s32.totalorder 0, %v404
    %v406 = vsel %vm405, 0, %v404
    %v407 = vsub.s32 32, %v406
    %v408 = vshll.u32 %v399, %v406
    %v409 = vshrl.u32 %v391, %v407
    %v410 = vor.u32 %v408, %v409
    %v411 = vsub.s32 4294967266, %v406
    %v412 = vadd.s32 %v411, 127
    %v413 = vshll.u32 %v412, 23
    %v414 = vor.u32 4788187, %v413
    %v415 = vand.u32 2147483647, %v414
    %v417 = vcvt.s32.f32 %v410
    %v418 = vmul.f32 %v417, %v415
    %v419 = vxor.u32 %v418, 2147483648
    %v420 = vsel %vm299, %v419, %v418
    %v421 = vsub.s32 4, %v397
    %v422 = vsel %vm299, %v421, %v397
    %v423 = vsel %vm298, %v288, %v420
    %v424 = vsel %vm298, 0, %v422
    %v425 = vmul.f32 %v423, %v423
    %v426 = vmul.f32 %v425, -0.001358992
    %v427 = vadd.f32 %v426, 0.041655596
    %v428 = vmul.f32 %v425, %v427
    %v429 = vadd.f32 %v428, -0.4999988
    %v430 = vmul.f32 %v425, %v429
    %v431 = vadd.f32 1.0, %v430
    %v432 = vmul.f32 %v423, %v423
    %v433 = vmul.f32 %v432, -0.00019511016
    %v434 = vadd.f32 %v433, 0.008332121
    %v435 = vmul.f32 %v432, %v434
    %v436 = vadd.f32 %v435, -0.16666654
    %v437 = vmul.f32 %v432, %v436
    %v438 = vadd.f32 %v437, 1.0
    %v439 = vmul.f32 %v438, %v423
    %vm440 = vweird.f32 %v288
    %v441 = vadd.s32 %v424, 3
    %v442 = vand.u32 %v441, 3
    %vm443 = vcmp.lt.s32.totalorder %v442, 2
    %vm444 = vcmp.eq.s32.totalorder %v442, 0
    %v445 = vxor.u32 %v439, 2147483648
    %v446 = vsel %vm444, %v431, %v445
    %vm447 = vcmp.eq.s32.totalorder %v442, 2
    %v448 = vxor.u32 %v431, 2147483648
    %v449 = vsel %vm447, %v448, %v439
    %v450 = vsel %vm443, %v446, %v449
    %v451 = vsel %vm440, nan, %v450
    %v452 = vand.u32 2147483647, %v289
    %vm453 = vcmp.le.f32.partialorder %v452, 0.7853982
    %vm454 = vcmp.lt.s32.totalorder %v289, 0
    %v455 = vand.u32 %v289, 2139095040
    %v456 = vshrl.u32 %v455, 23
    %v457 = vsub.s32 %v456, 127
    %v458 = vand.u32 2147483647, %v289
    %v459 = vand.u32 %v458, 8388607
    %v460 = vor.u32 %v459, 8388608
    %v461 = vsub.s32 0, %v460
    %v462 = vadd.s32 %v457, 1
    %vm463 = vcmp.gt.s32.totalorder %v462, 0
    %v464 = vsel %vm463, %v462, 0
    %v465 = vshrl.u32 %v464, 5
    %v466 = vand.u32 %v464, 31
    %v467 = vsub.s32 32, %v466
    %v468 = vshrl.u32 683565275, %v467
    %v469 = vshll.u32 683565275, %v466
    %v470 = vshrl.u32 2475754826, %v467
    %v471 = vor.u32 %v469, %v470
    %v472 = vshll.u32 2475754826, %v466
    %v473 = vshrl.u32 2131351028, %v467
    %v474 = vor.u32 %v472, %v473
    %v475 = vshll.u32 2131351028, %v466
    %v476 = vshrl.u32 2102212464, %v467
    %v477 = vor.u32 %v475, %v476
    %v478 = vshll.u32 2102212464, %v466
    %v479 = vshrl.u32 920167782, %v467
    %v480 = vor.u32 %v478, %v479
    %v481 = vshll.u32 920167782, %v466
    %v482 = vshrl.u32 1326507024, %v467
    %v483 = vor.u32 %v481, %v482
    %vm484 = vcmp.lt.s32.totalorder %v465, 1
    %vm485 = vcmp.lt.s32.totalorder %v465, 2
    %vm486 = vcmp.lt.s32.totalorder %v465, 3
    %vm487 = vcmp.lt.s32.totalorder %v465, 4
    %v488 = vsel %vm484, %v468, %v471
    %v489 = vsel %vm487, %v477, 2102212464
    %v490 = vsel %vm486, %v474, %v489
    %v491 = vsel %vm485, %v488, %v490
    %v492 = vsel %vm484, %v471, %v474
    %v493 = vsel %vm487, %v480, 920167782
    %v494 = vsel %vm486, %v477, %v493
    %v495 = vsel %vm485, %v492, %v494
    %v496 = vsel %vm484, %v474, %v477
    %v497 = vsel %vm487, %v483, 1326507024
    %v498 = vsel %vm486, %v480, %v497
    %v499 = vsel %vm485, %v496, %v498
    %v500 = vshll.u32 %v460, 8
    %v501 = vand.u32 %v500, 65535
    %v502 = vshrl.u32 %v500, 16
    %v503 = vand.u32 %v499, 65535
    %v504 = vshrl.u32 %v499, 16
    %v505 = vmul.u32 %v501, %v503
    %v506 = vmul.u32 %v501, %v504
    %v507 = vmul.u32 %v502, %v503
    %v508 = vmul.u32 %v502, %v504
    %v509 = vshll.u32 %v506, 16
    %v510 = vshrl.u32 %v506, 16
    %v511 = vshll.u32 %v507, 16
    %v512 = vshrl.u32 %v507, 16
    %vm513 = vc.u32 %v505, %v509
    %v514 = vsel %vm513, 1, 0
    %v515 = vadd.s32 %v505, %v509
    %v516 = vadd.s32 %v508, %v514
    %vm517 = vc.u32 %v515, %v511
    %v518 = vsel %vm517, 1, 0
    %v519 = vadd.s32 %v515, %v511
    %v520 = vadd.s32 %v516, %v518
    %v521 = vadd.s32 %v520, %v510
    %v522 = vadd.s32 %v521, %v512
    %v523 = vand.u32 %v500, 65535
    %v524 = vshrl.u32 %v500, 16
    %v525 = vand.u32 %v495, 65535
    %v526 = vshrl.u32 %v495, 16
    %v527 = vmul.u32 %v523, %v525
    %v528 = vmul.u32 %v523, %v526
    %v529 = vmul.u32 %v524, %v525
    %v530 = vmul.u32 %v524, %v526
    %v531 = vshll.u32 %v528, 16
    %v532 = vshrl.u32 %v528, 16
    %v533 = vshll.u32 %v529, 16
    %v534 = vshrl.u32 %v529, 16
    %vm535 = vc.u32 %v527, %v531
    %v536 = vsel %vm535, 1, 0
    %v537 = vadd.s32 %v527, %v531
    %v538 = vadd.s32 %v530, %v536
    %vm539 = vc.u32 %v537, %v533
    %v540 = vsel %vm539, 1, 0
    %v541 = vadd.s32 %v537, %v533
    %v542 = vadd.s32 %v538, %v540
    %v543 = vadd.s32 %v542, %v532
    %v544 = vadd.s32 %v543, %v534
    %v545 = vmul.u32 %v500, %v491
    %v546 = vadd.s32 %v522, %v541
    %vm547 = vc.u32 %v522, %v541
    %v548 = vadd.s32 %v544, 1
    %v549 = vsel %vm547, %v548, %v544
    %v550 = vadd.s32 %v545, %v549
    %v551 = vadd.s32 %v550, 536870912
    %v552 = vshrl.u32 %v551, 30
    %v553 = vshll.u32 %v552, 30
    %v554 = vsub.s32 %v550, %v553
    %vm555 = vcmp.lt.s32.totalorder %v554, 0
    %v556 = vsub.s32 0, %v554
    %v557 = vsel %vm555, %v556, %v554
    %v558 = vclz %v557
    %v559 = vsub.s32 %v558, 2
    %vm560 = vcmp.gt.s32.totalorder 0, %v559
    %v561 = vsel %vm560, 0, %v559
    %v562 = vsub.s32 32, %v561
    %v563 = vshll.u32 %v554, %v561
    %v564 = vshrl.u32 %v546, %v562
    %v565 = vor.u32 %v563, %v564
    %v566 = vsub.s32 4294967266, %v561
    %v567 = vadd.s32 %v566, 127
    %v568 = vshll.u32 %v567, 23
    %v569 = vor.u32 4788187, %v568
    %v570 = vand.u32 2147483647, %v569
    %v572 = vcvt.s32.f32 %v565
    %v573 = vmul.f32 %v572, %v570
    %v574 = vxor.u32 %v573, 2147483648
    %v575 = vsel %vm454, %v574, %v573
    %v576 = vsub.s32 4, %v552
    %v577 = vsel %vm454, %v576, %v552
    %v578 = vsel %vm453, %v289, %v575
    %v579 = vsel %vm453, 0, %v577
    %v580 = vmul.f32 %v578, %v578
    %v581 = vmul.f32 %v580, -0.001358992
    %v582 = vadd.f32 %v581, 0.041655596
    %v583 = vmul.f32 %v580, %v582
    %v584 = vadd.f32 %v583, -0.4999988
    %v585 = vmul.f32 %v580, %v584
    %v586 = vadd.f32 1.0, %v585
    %v587 = vmul.f32 %v578, %v578
    %v588 = vmul.f32 %v587, -0.00019511016
    %v589 = vadd.f32 %v588, 0.008332121
    %v590 = vmul.f32 %v587, %v589
    %v591 = vadd.f32 %v590, -0.16666654
    %v592 = vmul.f32 %v587, %v591
    %v593 = vadd.f32 %v592, 1.0
    %v594 = vmul.f32 %v593, %v578
    %vm595 = vweird.f32 %v289
    %v596 = vadd.s32 %v579, 3
    %v597 = vand.u32 %v596, 3
    %vm598 = vcmp.lt.s32.totalorder %v597, 2
    %vm599 = vcmp.eq.s32.totalorder %v597, 0
    %v600 = vxor.u32 %v594, 2147483648
    %v601 = vsel %vm599, %v586, %v600
    %vm602 = vcmp.eq.s32.totalorder %v597, 2
    %v603 = vxor.u32 %v586, 2147483648
    %v604 = vsel %vm602, %v603, %v594
    %v605 = vsel %vm598, %v601, %v604
    %v606 = vsel %vm595, nan, %v605
    %v607 = vand.u32 2147483647, %v290
    %vm608 = vcmp.le.f32.partialorder %v607, 0.7853982
    %vm609 = vcmp.lt.s32.totalorder %v290, 0
    %v610 = vand.u32 %v290, 2139095040
    %v611 = vshrl.u32 %v610, 23
    %v612 = vsub.s32 %v611, 127
    %v613 = vand.u32 2147483647, %v290
    %v614 = vand.u32 %v613, 8388607
    %v615 = vor.u32 %v614, 8388608
    %v616 = vsub.s32 0, %v615
    %v617 = vadd.s32 %v612, 1
    %vm618 = vcmp.gt.s32.totalorder %v617, 0
    %v619 = vsel %vm618, %v617, 0
    %v620 = vshrl.u32 %v619, 5
    %v621 = vand.u32 %v619, 31
    %v622 = vsub.s32 32, %v621
    %v623 = vshrl.u32 683565275, %v622
    %v624 = vshll.u32 683565275, %v621
    %v625 = vshrl.u32 2475754826, %v622
    %v626 = vor.u32 %v624, %v625
    %v627 = vshll.u32 2475754826, %v621
    %v628 = vshrl.u32 2131351028, %v622
    %v629 = vor.u32 %v627, %v628
    %v630 = vshll.u32 2131351028, %v621
    %v631 = vshrl.u32 2102212464, %v622
    %v632 = vor.u32 %v630, %v631
    %v633 = vshll.u32 2102212464, %v621
    %v634 = vshrl.u32 920167782, %v622
    %v635 = vor.u32 %v633, %v634
    %v636 = vshll.u32 920167782, %v621
    %v637 = vshrl.u32 1326507024, %v622
    %v638 = vor.u32 %v636, %v637
    %vm639 = vcmp.lt.s32.totalorder %v620, 1
    %vm640 = vcmp.lt.s32.totalorder %v620, 2
    %vm641 = vcmp.lt.s32.totalorder %v620, 3
    %vm642 = vcmp.lt.s32.totalorder %v620, 4
    %v643 = vsel %vm639, %v623, %v626
    %v644 = vsel %vm642, %v632, 2102212464
    %v645 = vsel %vm641, %v629, %v644
    %v646 = vsel %vm640, %v643, %v645
    %v647 = vsel %vm639, %v626, %v629
    %v648 = vsel %vm642, %v635, 920167782
    %v649 = vsel %vm641, %v632, %v648
    %v650 = vsel %vm640, %v647, %v649
    %v651 = vsel %vm639, %v629, %v632
    %v652 = vsel %vm642, %v638, 1326507024
    %v653 = vsel %vm641, %v635, %v652
    %v654 = vsel %vm640, %v651, %v653
    %v655 = vshll.u32 %v615, 8
    %v656 = vand.u32 %v655, 65535
    %v657 = vshrl.u32 %v655, 16
    %v658 = vand.u32 %v654, 65535
    %v659 = vshrl.u32 %v654, 16
    %v660 = vmul.u32 %v656, %v658
    %v661 = vmul.u32 %v656, %v659
    %v662 = vmul.u32 %v657, %v658
    %v663 = vmul.u32 %v657, %v659
    %v664 = vshll.u32 %v661, 16
    %v665 = vshrl.u32 %v661, 16
    %v666 = vshll.u32 %v662, 16
    %v667 = vshrl.u32 %v662, 16
    %vm668 = vc.u32 %v660, %v664
    %v669 = vsel %vm668, 1, 0
    %v670 = vadd.s32 %v660, %v664
    %v671 = vadd.s32 %v663, %v669
    %vm672 = vc.u32 %v670, %v666
    %v673 = vsel %vm672, 1, 0
    %v674 = vadd.s32 %v670, %v666
    %v675 = vadd.s32 %v671, %v673
    %v676 = vadd.s32 %v675, %v665
    %v677 = vadd.s32 %v676, %v667
    %v678 = vand.u32 %v655, 65535
    %v679 = vshrl.u32 %v655, 16
    %v680 = vand.u32 %v650, 65535
    %v681 = vshrl.u32 %v650, 16
    %v682 = vmul.u32 %v678, %v680
    %v683 = vmul.u32 %v678, %v681
    %v684 = vmul.u32 %v679, %v680
    %v685 = vmul.u32 %v679, %v681
    %v686 = vshll.u32 %v683, 16
    %v687 = vshrl.u32 %v683, 16
    %v688 = vshll.u32 %v684, 16
    %v689 = vshrl.u32 %v684, 16
    %vm690 = vc.u32 %v682, %v686
    %v691 = vsel %vm690, 1, 0
    %v692 = vadd.s32 %v682, %v686
    %v693 = vadd.s32 %v685, %v691
    %vm694 = vc.u32 %v692, %v688
    %v695 = vsel %vm694, 1, 0
    %v696 = vadd.s32 %v692, %v688
    %v697 = vadd.s32 %v693, %v695
    %v698 = vadd.s32 %v697, %v687
    %v699 = vadd.s32 %v698, %v689
    %v700 = vmul.u32 %v655, %v646
    %v701 = vadd.s32 %v677, %v696
    %vm702 = vc.u32 %v677, %v696
    %v703 = vadd.s32 %v699, 1
    %v704 = vsel %vm702, %v703, %v699
    %v705 = vadd.s32 %v700, %v704
    %v706 = vadd.s32 %v705, 536870912
    %v707 = vshrl.u32 %v706, 30
    %v708 = vshll.u32 %v707, 30
    %v709 = vsub.s32 %v705, %v708
    %vm710 = vcmp.lt.s32.totalorder %v709, 0
    %v711 = vsub.s32 0, %v709
    %v712 = vsel %vm710, %v711, %v709
    %v713 = vclz %v712
    %v714 = vsub.s32 %v713, 2
    %vm715 = vcmp.gt.s32.totalorder 0, %v714
    %v716 = vsel %vm715, 0, %v714
    %v717 = vsub.s32 32, %v716
    %v718 = vshll.u32 %v709, %v716
    %v719 = vshrl.u32 %v701, %v717
    %v720 = vor.u32 %v718, %v719
    %v721 = vsub.s32 4294967266, %v716
    %v722 = vadd.s32 %v721, 127
    %v723 = vshll.u32 %v722, 23
    %v724 = vor.u32 4788187, %v723
    %v725 = vand.u32 2147483647, %v724
    %v727 = vcvt.s32.f32 %v720
    %v728 = vmul.f32 %v727, %v725
    %v729 = vxor.u32 %v728, 2147483648
    %v730 = vsel %vm609, %v729, %v728
    %v731 = vsub.s32 4, %v707
    %v732 = vsel %vm609, %v731, %v707
    %v733 = vsel %vm608, %v290, %v730
    %v734 = vsel %vm608, 0, %v732
    %v735 = vmul.f32 %v733, %v733
    %v736 = vmul.f32 %v735, -0.001358992
    %v737 = vadd.f32 %v736, 0.041655596
    %v738 = vmul.f32 %v735, %v737
    %v739 = vadd.f32 %v738, -0.4999988
    %v740 = vmul.f32 %v735, %v739
    %v741 = vadd.f32 1.0, %v740
    %v742 = vmul.f32 %v733, %v733
    %v743 = vmul.f32 %v742, -0.00019511016
    %v744 = vadd.f32 %v743, 0.008332121
    %v745 = vmul.f32 %v742, %v744
    %v746 = vadd.f32 %v745, -0.16666654
    %v747 = vmul.f32 %v742, %v746
    %v748 = vadd.f32 %v747, 1.0
    %v749 = vmul.f32 %v748, %v733
    %vm750 = vweird.f32 %v290
    %v751 = vadd.s32 %v734, 3
    %v752 = vand.u32 %v751, 3
    %vm753 = vcmp.lt.s32.totalorder %v752, 2
    %vm754 = vcmp.eq.s32.totalorder %v752, 0
    %v755 = vxor.u32 %v749, 2147483648
    %v756 = vsel %vm754, %v741, %v755
    %vm757 = vcmp.eq.s32.totalorder %v752, 2
    %v758 = vxor.u32 %v741, 2147483648
    %v759 = vsel %vm757, %v758, %v749
    %v760 = vsel %vm753, %v756, %v759
    %v761 = vsel %vm750, nan, %v760
    %v762 = vand.u32 2147483647, %v291
    %vm763 = vcmp.le.f32.partialorder %v762, 0.7853982
    %vm764 = vcmp.lt.s32.totalorder %v291, 0
    %v765 = vand.u32 %v291, 2139095040
    %v766 = vshrl.u32 %v765, 23
    %v767 = vsub.s32 %v766, 127
    %v768 = vand.u32 2147483647, %v291
    %v769 = vand.u32 %v768, 8388607
    %v770 = vor.u32 %v769, 8388608
    %v771 = vsub.s32 0, %v770
    %v772 = vadd.s32 %v767, 1
    %vm773 = vcmp.gt.s32.totalorder %v772, 0
    %v774 = vsel %vm773, %v772, 0
    %v775 = vshrl.u32 %v774, 5
    %v776 = vand.u32 %v774, 31
    %v777 = vsub.s32 32, %v776
    %v778 = vshrl.u32 683565275, %v777
    %v779 = vshll.u32 683565275, %v776
    %v780 = vshrl.u32 2475754826, %v777
    %v781 = vor.u32 %v779, %v780
    %v782 = vshll.u32 2475754826, %v776
    %v783 = vshrl.u32 2131351028, %v777
    %v784 = vor.u32 %v782, %v783
    %v785 = vshll.u32 2131351028, %v776
    %v786 = vshrl.u32 2102212464, %v777
    %v787 = vor.u32 %v785, %v786
    %v788 = vshll.u32 2102212464, %v776
    %v789 = vshrl.u32 920167782, %v777
    %v790 = vor.u32 %v788, %v789
    %v791 = vshll.u32 920167782, %v776
    %v792 = vshrl.u32 1326507024, %v777
    %v793 = vor.u32 %v791, %v792
    %vm794 = vcmp.lt.s32.totalorder %v775, 1
    %vm795 = vcmp.lt.s32.totalorder %v775, 2
    %vm796 = vcmp.lt.s32.totalorder %v775, 3
    %vm797 = vcmp.lt.s32.totalorder %v775, 4
    %v798 = vsel %vm794, %v778, %v781
    %v799 = vsel %vm797, %v787, 2102212464
    %v800 = vsel %vm796, %v784, %v799
    %v801 = vsel %vm795, %v798, %v800
    %v802 = vsel %vm794, %v781, %v784
    %v803 = vsel %vm797, %v790, 920167782
    %v804 = vsel %vm796, %v787, %v803
    %v805 = vsel %vm795, %v802, %v804
    %v806 = vsel %vm794, %v784, %v787
    %v807 = vsel %vm797, %v793, 1326507024
    %v808 = vsel %vm796, %v790, %v807
    %v809 = vsel %vm795, %v806, %v808
    %v810 = vshll.u32 %v770, 8
    %v811 = vand.u32 %v810, 65535
    %v812 = vshrl.u32 %v810, 16
    %v813 = vand.u32 %v809, 65535
    %v814 = vshrl.u32 %v809, 16
    %v815 = vmul.u32 %v811, %v813
    %v816 = vmul.u32 %v811, %v814
    %v817 = vmul.u32 %v812, %v813
    %v818 = vmul.u32 %v812, %v814
    %v819 = vshll.u32 %v816, 16
    %v820 = vshrl.u32 %v816, 16
    %v821 = vshll.u32 %v817, 16
    %v822 = vshrl.u32 %v817, 16
    %vm823 = vc.u32 %v815, %v819
    %v824 = vsel %vm823, 1, 0
    %v825 = vadd.s32 %v815, %v819
    %v826 = vadd.s32 %v818, %v824
    %vm827 = vc.u32 %v825, %v821
    %v828 = vsel %vm827, 1, 0
    %v829 = vadd.s32 %v825, %v821
    %v830 = vadd.s32 %v826, %v828
    %v831 = vadd.s32 %v830, %v820
    %v832 = vadd.s32 %v831, %v822
    %v833 = vand.u32 %v810, 65535
    %v834 = vshrl.u32 %v810, 16
    %v835 = vand.u32 %v805, 65535
    %v836 = vshrl.u32 %v805, 16
    %v837 = vmul.u32 %v833, %v835
    %v838 = vmul.u32 %v833, %v836
    %v839 = vmul.u32 %v834, %v835
    %v840 = vmul.u32 %v834, %v836
    %v841 = vshll.u32 %v838, 16
    %v842 = vshrl.u32 %v838, 16
    %v843 = vshll.u32 %v839, 16
    %v844 = vshrl.u32 %v839, 16
    %vm845 = vc.u32 %v837, %v841
    %v846 = vsel %vm845, 1, 0
    %v847 = vadd.s32 %v837, %v841
    %v848 = vadd.s32 %v840, %v846
    %vm849 = vc.u32 %v847, %v843
    %v850 = vsel %vm849, 1, 0
    %v851 = vadd.s32 %v847, %v843
    %v852 = vadd.s32 %v848, %v850
    %v853 = vadd.s32 %v852, %v842
    %v854 = vadd.s32 %v853, %v844
    %v855 = vmul.u32 %v810, %v801
    %v856 = vadd.s32 %v832, %v851
    %vm857 = vc.u32 %v832, %v851
    %v858 = vadd.s32 %v854, 1
    %v859 = vsel %vm857, %v858, %v854
    %v860 = vadd.s32 %v855, %v859
    %v861 = vadd.s32 %v860, 536870912
    %v862 = vshrl.u32 %v861, 30
    %v863 = vshll.u32 %v862, 30
    %v864 = vsub.s32 %v860, %v863
    %vm865 = vcmp.lt.s32.totalorder %v864, 0
    %v866 = vsub.s32 0, %v864
    %v867 = vsel %vm865, %v866, %v864
    %v868 = vclz %v867
    %v869 = vsub.s32 %v868, 2
    %vm870 = vcmp.gt.s32.totalorder 0, %v869
    %v871 = vsel %vm870, 0, %v869
    %v872 = vsub.s32 32, %v871
    %v873 = vshll.u32 %v864, %v871
    %v874 = vshrl.u32 %v856, %v872
    %v875 = vor.u32 %v873, %v874
    %v876 = vsub.s32 4294967266, %v871
    %v877 = vadd.s32 %v876, 127
    %v878 = vshll.u32 %v877, 23
    %v879 = vor.u32 4788187, %v878
    %v880 = vand.u32 2147483647, %v879
    %v882 = vcvt.s32.f32 %v875
    %v883 = vmul.f32 %v882, %v880
    %v884 = vxor.u32 %v883, 2147483648
    %v885 = vsel %vm764, %v884, %v883
    %v886 = vsub.s32 4, %v862
    %v887 = vsel %vm764, %v886, %v862
    %v888 = vsel %vm763, %v291, %v885
    %v889 = vsel %vm763, 0, %v887
    %v890 = vmul.f32 %v888, %v888
    %v891 = vmul.f32 %v890, -0.001358992
    %v892 = vadd.f32 %v891, 0.041655596
    %v893 = vmul.f32 %v890, %v892
    %v894 = vadd.f32 %v893, -0.4999988
    %v895 = vmul.f32 %v890, %v894
    %v896 = vadd.f32 1.0, %v895
    %v897 = vmul.f32 %v888, %v888
    %v898 = vmul.f32 %v897, -0.00019511016
    %v899 = vadd.f32 %v898, 0.008332121
    %v900 = vmul.f32 %v897, %v899
    %v901 = vadd.f32 %v900, -0.16666654
    %v902 = vmul.f32 %v897, %v901
    %v903 = vadd.f32 %v902, 1.0
    %v904 = vmul.f32 %v903, %v888
    %vm905 = vweird.f32 %v291
    %v906 = vadd.s32 %v889, 3
    %v907 = vand.u32 %v906, 3
    %vm908 = vcmp.lt.s32.totalorder %v907, 2
    %vm909 = vcmp.eq.s32.totalorder %v907, 0
    %v910 = vxor.u32 %v904, 2147483648
    %v911 = vsel %vm909, %v896, %v910
    %vm912 = vcmp.eq.s32.totalorder %v907, 2
    %v913 = vxor.u32 %v896, 2147483648
    %v914 = vsel %vm912, %v913, %v904
    %v915 = vsel %vm908, %v911, %v914
    %v916 = vsel %vm905, nan, %v915
    %v917 = vand.u32 2147483647, %v292
    %vm918 = vcmp.le.f32.partialorder %v917, 0.7853982
    %vm919 = vcmp.lt.s32.totalorder %v292, 0
    %v920 = vand.u32 %v292, 2139095040
    %v921 = vshrl.u32 %v920, 23
    %v922 = vsub.s32 %v921, 127
    %v923 = vand.u32 2147483647, %v292
    %v924 = vand.u32 %v923, 8388607
    %v925 = vor.u32 %v924, 8388608
    %v926 = vsub.s32 0, %v925
    %v927 = vadd.s32 %v922, 1
    %vm928 = vcmp.gt.s32.totalorder %v927, 0
    %v929 = vsel %vm928, %v927, 0
    %v930 = vshrl.u32 %v929, 5
    %v931 = vand.u32 %v929, 31
    %v932 = vsub.s32 32, %v931
    %v933 = vshrl.u32 683565275, %v932
    %v934 = vshll.u32 683565275, %v931
    %v935 = vshrl.u32 2475754826, %v932
    %v936 = vor.u32 %v934, %v935
    %v937 = vshll.u32 2475754826, %v931
    %v938 = vshrl.u32 2131351028, %v932
    %v939 = vor.u32 %v937, %v938
    %v940 = vshll.u32 2131351028, %v931
    %v941 = vshrl.u32 2102212464, %v932
    %v942 = vor.u32 %v940, %v941
    %v943 = vshll.u32 2102212464, %v931
    %v944 = vshrl.u32 920167782, %v932
    %v945 = vor.u32 %v943, %v944
    %v946 = vshll.u32 920167782, %v931
    %v947 = vshrl.u32 1326507024, %v932
    %v948 = vor.u32 %v946, %v947
    %vm949 = vcmp.lt.s32.totalorder %v930, 1
    %vm950 = vcmp.lt.s32.totalorder %v930, 2
    %vm951 = vcmp.lt.s32.totalorder %v930, 3
    %vm952 = vcmp.lt.s32.totalorder %v930, 4
    %v953 = vsel %vm949, %v933, %v936
    %v954 = vsel %vm952, %v942, 2102212464
    %v955 = vsel %vm951, %v939, %v954
    %v956 = vsel %vm950, %v953, %v955
    %v957 = vsel %vm949, %v936, %v939
    %v958 = vsel %vm952, %v945, 920167782
    %v959 = vsel %vm951, %v942, %v958
    %v960 = vsel %vm950, %v957, %v959
    %v961 = vsel %vm949, %v939, %v942
    %v962 = vsel %vm952, %v948, 1326507024
    %v963 = vsel %vm951, %v945, %v962
    %v964 = vsel %vm950, %v961, %v963
    %v965 = vshll.u32 %v925, 8
    %v966 = vand.u32 %v965, 65535
    %v967 = vshrl.u32 %v965, 16
    %v968 = vand.u32 %v964, 65535
    %v969 = vshrl.u32 %v964, 16
    %v970 = vmul.u32 %v966, %v968
    %v971 = vmul.u32 %v966, %v969
    %v972 = vmul.u32 %v967, %v968
    %v973 = vmul.u32 %v967, %v969
    %v974 = vshll.u32 %v971, 16
    %v975 = vshrl.u32 %v971, 16
    %v976 = vshll.u32 %v972, 16
    %v977 = vshrl.u32 %v972, 16
    %vm978 = vc.u32 %v970, %v974
    %v979 = vsel %vm978, 1, 0
    %v980 = vadd.s32 %v970, %v974
    %v981 = vadd.s32 %v973, %v979
    %vm982 = vc.u32 %v980, %v976
    %v983 = vsel %vm982, 1, 0
    %v984 = vadd.s32 %v980, %v976
    %v985 = vadd.s32 %v981, %v983
    %v986 = vadd.s32 %v985, %v975
    %v987 = vadd.s32 %v986, %v977
    %v988 = vand.u32 %v965, 65535
    %v989 = vshrl.u32 %v965, 16
    %v990 = vand.u32 %v960, 65535
    %v991 = vshrl.u32 %v960, 16
    %v992 = vmul.u32 %v988, %v990
    %v993 = vmul.u32 %v988, %v991
    %v994 = vmul.u32 %v989, %v990
    %v995 = vmul.u32 %v989, %v991
    %v996 = vshll.u32 %v993, 16
    %v997 = vshrl.u32 %v993, 16
    %v998 = vshll.u32 %v994, 16
    %v999 = vshrl.u32 %v994, 16
    %vm1000 = vc.u32 %v992, %v996
    %v1001 = vsel %vm1000, 1, 0
    %v1002 = vadd.s32 %v992, %v996
    %v1003 = vadd.s32 %v995, %v1001
    %vm1004 = vc.u32 %v1002, %v998
    %v1005 = vsel %vm1004, 1, 0
    %v1006 = vadd.s32 %v1002, %v998
    %v1007 = vadd.s32 %v1003, %v1005
    %v1008 = vadd.s32 %v1007, %v997
    %v1009 = vadd.s32 %v1008, %v999
    %v1010 = vmul.u32 %v965, %v956
    %v1011 = vadd.s32 %v987, %v1006
    %vm1012 = vc.u32 %v987, %v1006
    %v1013 = vadd.s32 %v1009, 1
    %v1014 = vsel %vm1012, %v1013, %v1009
    %v1015 = vadd.s32 %v1010, %v1014
    %v1016 = vadd.s32 %v1015, 536870912
    %v1017 = vshrl.u32 %v1016, 30
    %v1018 = vshll.u32 %v1017, 30
    %v1019 = vsub.s32 %v1015, %v1018
    %vm1020 = vcmp.lt.s32.totalorder %v1019, 0
    %v1021 = vsub.s32 0, %v1019
    %v1022 = vsel %vm1020, %v1021, %v1019
    %v1023 = vclz %v1022
    %v1024 = vsub.s32 %v1023, 2
    %vm1025 = vcmp.gt.s32.totalorder 0, %v1024
    %v1026 = vsel %vm1025, 0, %v1024
    %v1027 = vsub.s32 32, %v1026
    %v1028 = vshll.u32 %v1019, %v1026
    %v1029 = vshrl.u32 %v1011, %v1027
    %v1030 = vor.u32 %v1028, %v1029
    %v1031 = vsub.s32 4294967266, %v1026
    %v1032 = vadd.s32 %v1031, 127
    %v1033 = vshll.u32 %v1032, 23
    %v1034 = vor.u32 4788187, %v1033
    %v1035 = vand.u32 2147483647, %v1034
    %v1037 = vcvt.s32.f32 %v1030
    %v1038 = vmul.f32 %v1037, %v1035
    %v1039 = vxor.u32 %v1038, 2147483648
    %v1040 = vsel %vm919, %v1039, %v1038
    %v1041 = vsub.s32 4, %v1017
    %v1042 = vsel %vm919, %v1041, %v1017
    %v1043 = vsel %vm918, %v292, %v1040
    %v1044 = vsel %vm918, 0, %v1042
    %v1045 = vmul.f32 %v1043, %v1043
    %v1046 = vmul.f32 %v1045, -0.001358992
    %v1047 = vadd.f32 %v1046, 0.041655596
    %v1048 = vmul.f32 %v1045, %v1047
    %v1049 = vadd.f32 %v1048, -0.4999988
    %v1050 = vmul.f32 %v1045, %v1049
    %v1051 = vadd.f32 1.0, %v1050
    %v1052 = vmul.f32 %v1043, %v1043
    %v1053 = vmul.f32 %v1052, -0.00019511016
    %v1054 = vadd.f32 %v1053, 0.008332121
    %v1055 = vmul.f32 %v1052, %v1054
    %v1056 = vadd.f32 %v1055, -0.16666654
    %v1057 = vmul.f32 %v1052, %v1056
    %v1058 = vadd.f32 %v1057, 1.0
    %v1059 = vmul.f32 %v1058, %v1043
    %vm1060 = vweird.f32 %v292
    %v1061 = vadd.s32 %v1044, 3
    %v1062 = vand.u32 %v1061, 3
    %vm1063 = vcmp.lt.s32.totalorder %v1062, 2
    %vm1064 = vcmp.eq.s32.totalorder %v1062, 0
    %v1065 = vxor.u32 %v1059, 2147483648
    %v1066 = vsel %vm1064, %v1051, %v1065
    %vm1067 = vcmp.eq.s32.totalorder %v1062, 2
    %v1068 = vxor.u32 %v1051, 2147483648
    %v1069 = vsel %vm1067, %v1068, %v1059
    %v1070 = vsel %vm1063, %v1066, %v1069
    %v1071 = vsel %vm1060, nan, %v1070
    %v1072 = vand.u32 2147483647, %v293
    %vm1073 = vcmp.le.f32.partialorder %v1072, 0.7853982
    %vm1074 = vcmp.lt.s32.totalorder %v293, 0
    %v1075 = vand.u32 %v293, 2139095040
    %v1076 = vshrl.u32 %v1075, 23
    %v1077 = vsub.s32 %v1076, 127
    %v1078 = vand.u32 2147483647, %v293
    %v1079 = vand.u32 %v1078, 8388607
    %v1080 = vor.u32 %v1079, 8388608
    %v1081 = vsub.s32 0, %v1080
    %v1082 = vadd.s32 %v1077, 1
    %vm1083 = vcmp.gt.s32.totalorder %v1082, 0
    %v1084 = vsel %vm1083, %v1082, 0
    %v1085 = vshrl.u32 %v1084, 5
    %v1086 = vand.u32 %v1084, 31
    %v1087 = vsub.s32 32, %v1086
    %v1088 = vshrl.u32 683565275, %v1087
    %v1089 = vshll.u32 683565275, %v1086
    %v1090 = vshrl.u32 2475754826, %v1087
    %v1091 = vor.u32 %v1089, %v1090
    %v1092 = vshll.u32 2475754826, %v1086
    %v1093 = vshrl.u32 2131351028, %v1087
    %v1094 = vor.u32 %v1092, %v1093
    %v1095 = vshll.u32 2131351028, %v1086
    %v1096 = vshrl.u32 2102212464, %v1087
    %v1097 = vor.u32 %v1095, %v1096
    %v1098 = vshll.u32 2102212464, %v1086
    %v1099 = vshrl.u32 920167782, %v1087
    %v1100 = vor.u32 %v1098, %v1099
    %v1101 = vshll.u32 920167782, %v1086
    %v1102 = vshrl.u32 1326507024, %v1087
    %v1103 = vor.u32 %v1101, %v1102
    %vm1104 = vcmp.lt.s32.totalorder %v1085, 1
    %vm1105 = vcmp.lt.s32.totalorder %v1085, 2
    %vm1106 = vcmp.lt.s32.totalorder %v1085, 3
    %vm1107 = vcmp.lt.s32.totalorder %v1085, 4
    %v1108 = vsel %vm1104, %v1088, %v1091
    %v1109 = vsel %vm1107, %v1097, 2102212464
    %v1110 = vsel %vm1106, %v1094, %v1109
    %v1111 = vsel %vm1105, %v1108, %v1110
    %v1112 = vsel %vm1104, %v1091, %v1094
    %v1113 = vsel %vm1107, %v1100, 920167782
    %v1114 = vsel %vm1106, %v1097, %v1113
    %v1115 = vsel %vm1105, %v1112, %v1114
    %v1116 = vsel %vm1104, %v1094, %v1097
    %v1117 = vsel %vm1107, %v1103, 1326507024
    %v1118 = vsel %vm1106, %v1100, %v1117
    %v1119 = vsel %vm1105, %v1116, %v1118
    %v1120 = vshll.u32 %v1080, 8
    %v1121 = vand.u32 %v1120, 65535
    %v1122 = vshrl.u32 %v1120, 16
    %v1123 = vand.u32 %v1119, 65535
    %v1124 = vshrl.u32 %v1119, 16
    %v1125 = vmul.u32 %v1121, %v1123
    %v1126 = vmul.u32 %v1121, %v1124
    %v1127 = vmul.u32 %v1122, %v1123
    %v1128 = vmul.u32 %v1122, %v1124
    %v1129 = vshll.u32 %v1126, 16
    %v1130 = vshrl.u32 %v1126, 16
    %v1131 = vshll.u32 %v1127, 16
    %v1132 = vshrl.u32 %v1127, 16
    %vm1133 = vc.u32 %v1125, %v1129
    %v1134 = vsel %vm1133, 1, 0
    %v1135 = vadd.s32 %v1125, %v1129
    %v1136 = vadd.s32 %v1128, %v1134
    %vm1137 = vc.u32 %v1135, %v1131
    %v1138 = vsel %vm1137, 1, 0
    %v1139 = vadd.s32 %v1135, %v1131
    %v1140 = vadd.s32 %v1136, %v1138
    %v1141 = vadd.s32 %v1140, %v1130
    %v1142 = vadd.s32 %v1141, %v1132
    %v1143 = vand.u32 %v1120, 65535
    %v1144 = vshrl.u32 %v1120, 16
    %v1145 = vand.u32 %v1115, 65535
    %v1146 = vshrl.u32 %v1115, 16
    %v1147 = vmul.u32 %v1143, %v1145
    %v1148 = vmul.u32 %v1143, %v1146
    %v1149 = vmul.u32 %v1144, %v1145
    %v1150 = vmul.u32 %v1144, %v1146
    %v1151 = vshll.u32 %v1148, 16
    %v1152 = vshrl.u32 %v1148, 16
    %v1153 = vshll.u32 %v1149, 16
    %v1154 = vshrl.u32 %v1149, 16
    %vm1155 = vc.u32 %v1147, %v1151
    %v1156 = vsel %vm1155, 1, 0
    %v1157 = vadd.s32 %v1147, %v1151
    %v1158 = vadd.s32 %v1150, %v1156
    %vm1159 = vc.u32 %v1157, %v1153
    %v1160 = vsel %vm1159, 1, 0
    %v1161 = vadd.s32 %v1157, %v1153
    %v1162 = vadd.s32 %v1158, %v1160
    %v1163 = vadd.s32 %v1162, %v1152
    %v1164 = vadd.s32 %v1163, %v1154
    %v1165 = vmul.u32 %v1120, %v1111
    %v1166 = vadd.s32 %v1142, %v1161
    %vm1167 = vc.u32 %v1142, %v1161
    %v1168 = vadd.s32 %v1164, 1
    %v1169 = vsel %vm1167, %v1168, %v1164
    %v1170 = vadd.s32 %v1165, %v1169
    %v1171 = vadd.s32 %v1170, 536870912
    %v1172 = vshrl.u32 %v1171, 30
    %v1173 = vshll.u32 %v1172, 30
    %v1174 = vsub.s32 %v1170, %v1173
    %vm1175 = vcmp.lt.s32.totalorder %v1174, 0
    %v1176 = vsub.s32 0, %v1174
    %v1177 = vsel %vm1175, %v1176, %v1174
    %v1178 = vclz %v1177
    %v1179 = vsub.s32 %v1178, 2
    %vm1180 = vcmp.gt.s32.totalorder 0, %v1179
    %v1181 = vsel %vm1180, 0, %v1179
    %v1182 = vsub.s32 32, %v1181
    %v1183 = vshll.u32 %v1174, %v1181
    %v1184 = vshrl.u32 %v1166, %v1182
    %v1185 = vor.u32 %v1183, %v1184
    %v1186 = vsub.s32 4294967266, %v1181
    %v1187 = vadd.s32 %v1186, 127
    %v1188 = vshll.u32 %v1187, 23
    %v1189 = vor.u32 4788187, %v1188
    %v1190 = vand.u32 2147483647, %v1189
    %v1192 = vcvt.s32.f32 %v1185
    %v1193 = vmul.f32 %v1192, %v1190
    %v1194 = vxor.u32 %v1193, 2147483648
    %v1195 = vsel %vm1074, %v1194, %v1193
    %v1196 = vsub.s32 4, %v1172
    %v1197 = vsel %vm1074, %v1196, %v1172
    %v1198 = vsel %vm1073, %v293, %v1195
    %v1199 = vsel %vm1073, 0, %v1197
    %v1200 = vmul.f32 %v1198, %v1198
    %v1201 = vmul.f32 %v1200, -0.001358992
    %v1202 = vadd.f32 %v1201, 0.041655596
    %v1203 = vmul.f32 %v1200, %v1202
    %v1204 = vadd.f32 %v1203, -0.4999988
    %v1205 = vmul.f32 %v1200, %v1204
    %v1206 = vadd.f32 1.0, %v1205
    %v1207 = vmul.f32 %v1198, %v1198
    %v1208 = vmul.f32 %v1207, -0.00019511016
    %v1209 = vadd.f32 %v1208, 0.008332121
    %v1210 = vmul.f32 %v1207, %v1209
    %v1211 = vadd.f32 %v1210, -0.16666654
    %v1212 = vmul.f32 %v1207, %v1211
    %v1213 = vadd.f32 %v1212, 1.0
    %v1214 = vmul.f32 %v1213, %v1198
    %vm1215 = vweird.f32 %v293
    %v1216 = vadd.s32 %v1199, 3
    %v1217 = vand.u32 %v1216, 3
    %vm1218 = vcmp.lt.s32.totalorder %v1217, 2
    %vm1219 = vcmp.eq.s32.totalorder %v1217, 0
    %v1220 = vxor.u32 %v1214, 2147483648
    %v1221 = vsel %vm1219, %v1206, %v1220
    %vm1222 = vcmp.eq.s32.totalorder %v1217, 2
    %v1223 = vxor.u32 %v1206, 2147483648
    %v1224 = vsel %vm1222, %v1223, %v1214
    %v1225 = vsel %vm1218, %v1221, %v1224
    %v1226 = vsel %vm1215, nan, %v1225
    %v1227 = vand.u32 2147483647, %v294
    %vm1228 = vcmp.le.f32.partialorder %v1227, 0.7853982
    %vm1229 = vcmp.lt.s32.totalorder %v294, 0
    %v1230 = vand.u32 %v294, 2139095040
    %v1231 = vshrl.u32 %v1230, 23
    %v1232 = vsub.s32 %v1231, 127
    %v1233 = vand.u32 2147483647, %v294
    %v1234 = vand.u32 %v1233, 8388607
    %v1235 = vor.u32 %v1234, 8388608
    %v1236 = vsub.s32 0, %v1235
    %v1237 = vadd.s32 %v1232, 1
    %vm1238 = vcmp.gt.s32.totalorder %v1237, 0
    %v1239 = vsel %vm1238, %v1237, 0
    %v1240 = vshrl.u32 %v1239, 5
    %v1241 = vand.u32 %v1239, 31
    %v1242 = vsub.s32 32, %v1241
    %v1243 = vshrl.u32 683565275, %v1242
    %v1244 = vshll.u32 683565275, %v1241
    %v1245 = vshrl.u32 2475754826, %v1242
    %v1246 = vor.u32 %v1244, %v1245
    %v1247 = vshll.u32 2475754826, %v1241
    %v1248 = vshrl.u32 2131351028, %v1242
    %v1249 = vor.u32 %v1247, %v1248
    %v1250 = vshll.u32 2131351028, %v1241
    %v1251 = vshrl.u32 2102212464, %v1242
    %v1252 = vor.u32 %v1250, %v1251
    %v1253 = vshll.u32 2102212464, %v1241
    %v1254 = vshrl.u32 920167782, %v1242
    %v1255 = vor.u32 %v1253, %v1254
    %v1256 = vshll.u32 920167782, %v1241
    %v1257 = vshrl.u32 1326507024, %v1242
    %v1258 = vor.u32 %v1256, %v1257
    %vm1259 = vcmp.lt.s32.totalorder %v1240, 1
    %vm1260 = vcmp.lt.s32.totalorder %v1240, 2
    %vm1261 = vcmp.lt.s32.totalorder %v1240, 3
    %vm1262 = vcmp.lt.s32.totalorder %v1240, 4
    %v1263 = vsel %vm1259, %v1243, %v1246
    %v1264 = vsel %vm1262, %v1252, 2102212464
    %v1265 = vsel %vm1261, %v1249, %v1264
    %v1266 = vsel %vm1260, %v1263, %v1265
    %v1267 = vsel %vm1259, %v1246, %v1249
    %v1268 = vsel %vm1262, %v1255, 920167782
    %v1269 = vsel %vm1261, %v1252, %v1268
    %v1270 = vsel %vm1260, %v1267, %v1269
    %v1271 = vsel %vm1259, %v1249, %v1252
    %v1272 = vsel %vm1262, %v1258, 1326507024
    %v1273 = vsel %vm1261, %v1255, %v1272
    %v1274 = vsel %vm1260, %v1271, %v1273
    %v1275 = vshll.u32 %v1235, 8
    %v1276 = vand.u32 %v1275, 65535
    %v1277 = vshrl.u32 %v1275, 16
    %v1278 = vand.u32 %v1274, 65535
    %v1279 = vshrl.u32 %v1274, 16
    %v1280 = vmul.u32 %v1276, %v1278
    %v1281 = vmul.u32 %v1276, %v1279
    %v1282 = vmul.u32 %v1277, %v1278
    %v1283 = vmul.u32 %v1277, %v1279
    %v1284 = vshll.u32 %v1281, 16
    %v1285 = vshrl.u32 %v1281, 16
    %v1286 = vshll.u32 %v1282, 16
    %v1287 = vshrl.u32 %v1282, 16
    %vm1288 = vc.u32 %v1280, %v1284
    %v1289 = vsel %vm1288, 1, 0
    %v1290 = vadd.s32 %v1280, %v1284
    %v1291 = vadd.s32 %v1283, %v1289
    %vm1292 = vc.u32 %v1290, %v1286
    %v1293 = vsel %vm1292, 1, 0
    %v1294 = vadd.s32 %v1290, %v1286
    %v1295 = vadd.s32 %v1291, %v1293
    %v1296 = vadd.s32 %v1295, %v1285
    %v1297 = vadd.s32 %v1296, %v1287
    %v1298 = vand.u32 %v1275, 65535
    %v1299 = vshrl.u32 %v1275, 16
    %v1300 = vand.u32 %v1270, 65535
    %v1301 = vshrl.u32 %v1270, 16
    %v1302 = vmul.u32 %v1298, %v1300
    %v1303 = vmul.u32 %v1298, %v1301
    %v1304 = vmul.u32 %v1299, %v1300
    %v1305 = vmul.u32 %v1299, %v1301
    %v1306 = vshll.u32 %v1303, 16
    %v1307 = vshrl.u32 %v1303, 16
    %v1308 = vshll.u32 %v1304, 16
    %v1309 = vshrl.u32 %v1304, 16
    %vm1310 = vc.u32 %v1302, %v1306
    %v1311 = vsel %vm1310, 1, 0
    %v1312 = vadd.s32 %v1302, %v1306
    %v1313 = vadd.s32 %v1305, %v1311
    %vm1314 = vc.u32 %v1312, %v1308
    %v1315 = vsel %vm1314, 1, 0
    %v1316 = vadd.s32 %v1312, %v1308
    %v1317 = vadd.s32 %v1313, %v1315
    %v1318 = vadd.s32 %v1317, %v1307
    %v1319 = vadd.s32 %v1318, %v1309
    %v1320 = vmul.u32 %v1275, %v1266
    %v1321 = vadd.s32 %v1297, %v1316
    %vm1322 = vc.u32 %v1297, %v1316
    %v1323 = vadd.s32 %v1319, 1
    %v1324 = vsel %vm1322, %v1323, %v1319
    %v1325 = vadd.s32 %v1320, %v1324
    %v1326 = vadd.s32 %v1325, 536870912
    %v1327 = vshrl.u32 %v1326, 30
    %v1328 = vshll.u32 %v1327, 30
    %v1329 = vsub.s32 %v1325, %v1328
    %vm1330 = vcmp.lt.s32.totalorder %v1329, 0
    %v1331 = vsub.s32 0, %v1329
    %v1332 = vsel %vm1330, %v1331, %v1329
    %v1333 = vclz %v1332
    %v1334 = vsub.s32 %v1333, 2
    %vm1335 = vcmp.gt.s32.totalorder 0, %v1334
    %v1336 = vsel %vm1335, 0, %v1334
    %v1337 = vsub.s32 32, %v1336
    %v1338 = vshll.u32 %v1329, %v1336
    %v1339 = vshrl.u32 %v1321, %v1337
    %v1340 = vor.u32 %v1338, %v1339
    %v1341 = vsub.s32 4294967266, %v1336
    %v1342 = vadd.s32 %v1341, 127
    %v1343 = vshll.u32 %v1342, 23
    %v1344 = vor.u32 4788187, %v1343
    %v1345 = vand.u32 2147483647, %v1344
    %v1347 = vcvt.s32.f32 %v1340
    %v1348 = vmul.f32 %v1347, %v1345
    %v1349 = vxor.u32 %v1348, 2147483648
    %v1350 = vsel %vm1229, %v1349, %v1348
    %v1351 = vsub.s32 4, %v1327
    %v1352 = vsel %vm1229, %v1351, %v1327
    %v1353 = vsel %vm1228, %v294, %v1350
    %v1354 = vsel %vm1228, 0, %v1352
    %v1355 = vmul.f32 %v1353, %v1353
    %v1356 = vmul.f32 %v1355, -0.001358992
    %v1357 = vadd.f32 %v1356, 0.041655596
    %v1358 = vmul.f32 %v1355, %v1357
    %v1359 = vadd.f32 %v1358, -0.4999988
    %v1360 = vmul.f32 %v1355, %v1359
    %v1361 = vadd.f32 1.0, %v1360
    %v1362 = vmul.f32 %v1353, %v1353
    %v1363 = vmul.f32 %v1362, -0.00019511016
    %v1364 = vadd.f32 %v1363, 0.008332121
    %v1365 = vmul.f32 %v1362, %v1364
    %v1366 = vadd.f32 %v1365, -0.16666654
    %v1367 = vmul.f32 %v1362, %v1366
    %v1368 = vadd.f32 %v1367, 1.0
    %v1369 = vmul.f32 %v1368, %v1353
    %vm1370 = vweird.f32 %v294
    %v1371 = vadd.s32 %v1354, 3
    %v1372 = vand.u32 %v1371, 3
    %vm1373 = vcmp.lt.s32.totalorder %v1372, 2
    %vm1374 = vcmp.eq.s32.totalorder %v1372, 0
    %v1375 = vxor.u32 %v1369, 2147483648
    %v1376 = vsel %vm1374, %v1361, %v1375
    %vm1377 = vcmp.eq.s32.totalorder %v1372, 2
    %v1378 = vxor.u32 %v1361, 2147483648
    %v1379 = vsel %vm1377, %v1378, %v1369
    %v1380 = vsel %vm1373, %v1376, %v1379
    %v1381 = vsel %vm1370, nan, %v1380
    %v1382 = vand.u32 2147483647, %v295
    %vm1383 = vcmp.le.f32.partialorder %v1382, 0.7853982
    %vm1384 = vcmp.lt.s32.totalorder %v295, 0
    %v1385 = vand.u32 %v295, 2139095040
    %v1386 = vshrl.u32 %v1385, 23
    %v1387 = vsub.s32 %v1386, 127
    %v1388 = vand.u32 2147483647, %v295
    %v1389 = vand.u32 %v1388, 8388607
    %v1390 = vor.u32 %v1389, 8388608
    %v1391 = vsub.s32 0, %v1390
    %v1392 = vadd.s32 %v1387, 1
    %vm1393 = vcmp.gt.s32.totalorder %v1392, 0
    %v1394 = vsel %vm1393, %v1392, 0
    %v1395 = vshrl.u32 %v1394, 5
    %v1396 = vand.u32 %v1394, 31
    %v1397 = vsub.s32 32, %v1396
    %v1398 = vshrl.u32 683565275, %v1397
    %v1399 = vshll.u32 683565275, %v1396
    %v1400 = vshrl.u32 2475754826, %v1397
    %v1401 = vor.u32 %v1399, %v1400
    %v1402 = vshll.u32 2475754826, %v1396
    %v1403 = vshrl.u32 2131351028, %v1397
    %v1404 = vor.u32 %v1402, %v1403
    %v1405 = vshll.u32 2131351028, %v1396
    %v1406 = vshrl.u32 2102212464, %v1397
    %v1407 = vor.u32 %v1405, %v1406
    %v1408 = vshll.u32 2102212464, %v1396
    %v1409 = vshrl.u32 920167782, %v1397
    %v1410 = vor.u32 %v1408, %v1409
    %v1411 = vshll.u32 920167782, %v1396
    %v1412 = vshrl.u32 1326507024, %v1397
    %v1413 = vor.u32 %v1411, %v1412
    %vm1414 = vcmp.lt.s32.totalorder %v1395, 1
    %vm1415 = vcmp.lt.s32.totalorder %v1395, 2
    %vm1416 = vcmp.lt.s32.totalorder %v1395, 3
    %vm1417 = vcmp.lt.s32.totalorder %v1395, 4
    %v1418 = vsel %vm1414, %v1398, %v1401
    %v1419 = vsel %vm1417, %v1407, 2102212464
    %v1420 = vsel %vm1416, %v1404, %v1419
    %v1421 = vsel %vm1415, %v1418, %v1420
    %v1422 = vsel %vm1414, %v1401, %v1404
    %v1423 = vsel %vm1417, %v1410, 920167782
    %v1424 = vsel %vm1416, %v1407, %v1423
    %v1425 = vsel %vm1415, %v1422, %v1424
    %v1426 = vsel %vm1414, %v1404, %v1407
    %v1427 = vsel %vm1417, %v1413, 1326507024
    %v1428 = vsel %vm1416, %v1410, %v1427
    %v1429 = vsel %vm1415, %v1426, %v1428
    %v1430 = vshll.u32 %v1390, 8
    %v1431 = vand.u32 %v1430, 65535
    %v1432 = vshrl.u32 %v1430, 16
    %v1433 = vand.u32 %v1429, 65535
    %v1434 = vshrl.u32 %v1429, 16
    %v1435 = vmul.u32 %v1431, %v1433
    %v1436 = vmul.u32 %v1431, %v1434
    %v1437 = vmul.u32 %v1432, %v1433
    %v1438 = vmul.u32 %v1432, %v1434
    %v1439 = vshll.u32 %v1436, 16
    %v1440 = vshrl.u32 %v1436, 16
    %v1441 = vshll.u32 %v1437, 16
    %v1442 = vshrl.u32 %v1437, 16
    %vm1443 = vc.u32 %v1435, %v1439
    %v1444 = vsel %vm1443, 1, 0
    %v1445 = vadd.s32 %v1435, %v1439
    %v1446 = vadd.s32 %v1438, %v1444
    %vm1447 = vc.u32 %v1445, %v1441
    %v1448 = vsel %vm1447, 1, 0
    %v1449 = vadd.s32 %v1445, %v1441
    %v1450 = vadd.s32 %v1446, %v1448
    %v1451 = vadd.s32 %v1450, %v1440
    %v1452 = vadd.s32 %v1451, %v1442
    %v1453 = vand.u32 %v1430, 65535
    %v1454 = vshrl.u32 %v1430, 16
    %v1455 = vand.u32 %v1425, 65535
    %v1456 = vshrl.u32 %v1425, 16
    %v1457 = vmul.u32 %v1453, %v1455
    %v1458 = vmul.u32 %v1453, %v1456
    %v1459 = vmul.u32 %v1454, %v1455
    %v1460 = vmul.u32 %v1454, %v1456
    %v1461 = vshll.u32 %v1458, 16
    %v1462 = vshrl.u32 %v1458, 16
    %v1463 = vshll.u32 %v1459, 16
    %v1464 = vshrl.u32 %v1459, 16
    %vm1465 = vc.u32 %v1457, %v1461
    %v1466 = vsel %vm1465, 1, 0
    %v1467 = vadd.s32 %v1457, %v1461
    %v1468 = vadd.s32 %v1460, %v1466
    %vm1469 = vc.u32 %v1467, %v1463
    %v1470 = vsel %vm1469, 1, 0
    %v1471 = vadd.s32 %v1467, %v1463
    %v1472 = vadd.s32 %v1468, %v1470
    %v1473 = vadd.s32 %v1472, %v1462
    %v1474 = vadd.s32 %v1473, %v1464
    %v1475 = vmul.u32 %v1430, %v1421
    %v1476 = vadd.s32 %v1452, %v1471
    %vm1477 = vc.u32 %v1452, %v1471
    %v1478 = vadd.s32 %v1474, 1
    %v1479 = vsel %vm1477, %v1478, %v1474
    %v1480 = vadd.s32 %v1475, %v1479
    %v1481 = vadd.s32 %v1480, 536870912
    %v1482 = vshrl.u32 %v1481, 30
    %v1483 = vshll.u32 %v1482, 30
    %v1484 = vsub.s32 %v1480, %v1483
    %vm1485 = vcmp.lt.s32.totalorder %v1484, 0
    %v1486 = vsub.s32 0, %v1484
    %v1487 = vsel %vm1485, %v1486, %v1484
    %v1488 = vclz %v1487
    %v1489 = vsub.s32 %v1488, 2
    %vm1490 = vcmp.gt.s32.totalorder 0, %v1489
    %v1491 = vsel %vm1490, 0, %v1489
    %v1492 = vsub.s32 32, %v1491
    %v1493 = vshll.u32 %v1484, %v1491
    %v1494 = vshrl.u32 %v1476, %v1492
    %v1495 = vor.u32 %v1493, %v1494
    %v1496 = vsub.s32 4294967266, %v1491
    %v1497 = vadd.s32 %v1496, 127
    %v1498 = vshll.u32 %v1497, 23
    %v1499 = vor.u32 4788187, %v1498
    %v1500 = vand.u32 2147483647, %v1499
    %v1502 = vcvt.s32.f32 %v1495
    %v1503 = vmul.f32 %v1502, %v1500
    %v1504 = vxor.u32 %v1503, 2147483648
    %v1505 = vsel %vm1384, %v1504, %v1503
    %v1506 = vsub.s32 4, %v1482
    %v1507 = vsel %vm1384, %v1506, %v1482
    %v1508 = vsel %vm1383, %v295, %v1505
    %v1509 = vsel %vm1383, 0, %v1507
    %v1510 = vmul.f32 %v1508, %v1508
    %v1511 = vmul.f32 %v1510, -0.001358992
    %v1512 = vadd.f32 %v1511, 0.041655596
    %v1513 = vmul.f32 %v1510, %v1512
    %v1514 = vadd.f32 %v1513, -0.4999988
    %v1515 = vmul.f32 %v1510, %v1514
    %v1516 = vadd.f32 1.0, %v1515
    %v1517 = vmul.f32 %v1508, %v1508
    %v1518 = vmul.f32 %v1517, -0.00019511016
    %v1519 = vadd.f32 %v1518, 0.008332121
    %v1520 = vmul.f32 %v1517, %v1519
    %v1521 = vadd.f32 %v1520, -0.16666654
    %v1522 = vmul.f32 %v1517, %v1521
    %v1523 = vadd.f32 %v1522, 1.0
    %v1524 = vmul.f32 %v1523, %v1508
    %vm1525 = vweird.f32 %v295
    %v1526 = vadd.s32 %v1509, 3
    %v1527 = vand.u32 %v1526, 3
    %vm1528 = vcmp.lt.s32.totalorder %v1527, 2
    %vm1529 = vcmp.eq.s32.totalorder %v1527, 0
    %v1530 = vxor.u32 %v1524, 2147483648
    %v1531 = vsel %vm1529, %v1516, %v1530
    %vm1532 = vcmp.eq.s32.totalorder %v1527, 2
    %v1533 = vxor.u32 %v1516, 2147483648
    %v1534 = vsel %vm1532, %v1533, %v1524
    %v1535 = vsel %vm1528, %v1531, %v1534
    %v1536 = vsel %vm1525, nan, %v1535
    %v1537 = vand.u32 2147483647, %v288
    %vm1538 = vcmp.le.f32.partialorder %v1537, 0.7853982
    %vm1539 = vcmp.lt.s32.totalorder %v288, 0
    %v1540 = vand.u32 %v288, 2139095040
    %v1541 = vshrl.u32 %v1540, 23
    %v1542 = vsub.s32 %v1541, 127
    %v1543 = vand.u32 2147483647, %v288
    %v1544 = vand.u32 %v1543, 8388607
    %v1545 = vor.u32 %v1544, 8388608
    %v1546 = vsub.s32 0, %v1545
    %v1547 = vadd.s32 %v1542, 1
    %vm1548 = vcmp.gt.s32.totalorder %v1547, 0
    %v1549 = vsel %vm1548, %v1547, 0
    %v1550 = vshrl.u32 %v1549, 5
    %v1551 = vand.u32 %v1549, 31
    %v1552 = vsub.s32 32, %v1551
    %v1553 = vshrl.u32 683565275, %v1552
    %v1554 = vshll.u32 683565275, %v1551
    %v1555 = vshrl.u32 2475754826, %v1552
    %v1556 = vor.u32 %v1554, %v1555
    %v1557 = vshll.u32 2475754826, %v1551
    %v1558 = vshrl.u32 2131351028, %v1552
    %v1559 = vor.u32 %v1557, %v1558
    %v1560 = vshll.u32 2131351028, %v1551
    %v1561 = vshrl.u32 2102212464, %v1552
    %v1562 = vor.u32 %v1560, %v1561
    %v1563 = vshll.u32 2102212464, %v1551
    %v1564 = vshrl.u32 920167782, %v1552
    %v1565 = vor.u32 %v1563, %v1564
    %v1566 = vshll.u32 920167782, %v1551
    %v1567 = vshrl.u32 1326507024, %v1552
    %v1568 = vor.u32 %v1566, %v1567
    %vm1569 = vcmp.lt.s32.totalorder %v1550, 1
    %vm1570 = vcmp.lt.s32.totalorder %v1550, 2
    %vm1571 = vcmp.lt.s32.totalorder %v1550, 3
    %vm1572 = vcmp.lt.s32.totalorder %v1550, 4
    %v1573 = vsel %vm1569, %v1553, %v1556
    %v1574 = vsel %vm1572, %v1562, 2102212464
    %v1575 = vsel %vm1571, %v1559, %v1574
    %v1576 = vsel %vm1570, %v1573, %v1575
    %v1577 = vsel %vm1569, %v1556, %v1559
    %v1578 = vsel %vm1572, %v1565, 920167782
    %v1579 = vsel %vm1571, %v1562, %v1578
    %v1580 = vsel %vm1570, %v1577, %v1579
    %v1581 = vsel %vm1569, %v1559, %v1562
    %v1582 = vsel %vm1572, %v1568, 1326507024
    %v1583 = vsel %vm1571, %v1565, %v1582
    %v1584 = vsel %vm1570, %v1581, %v1583
    %v1585 = vshll.u32 %v1545, 8
    %v1586 = vand.u32 %v1585, 65535
    %v1587 = vshrl.u32 %v1585, 16
    %v1588 = vand.u32 %v1584, 65535
    %v1589 = vshrl.u32 %v1584, 16
    %v1590 = vmul.u32 %v1586, %v1588
    %v1591 = vmul.u32 %v1586, %v1589
    %v1592 = vmul.u32 %v1587, %v1588
    %v1593 = vmul.u32 %v1587, %v1589
    %v1594 = vshll.u32 %v1591, 16
    %v1595 = vshrl.u32 %v1591, 16
    %v1596 = vshll.u32 %v1592, 16
    %v1597 = vshrl.u32 %v1592, 16
    %vm1598 = vc.u32 %v1590, %v1594
    %v1599 = vsel %vm1598, 1, 0
    %v1600 = vadd.s32 %v1590, %v1594
    %v1601 = vadd.s32 %v1593, %v1599
    %vm1602 = vc.u32 %v1600, %v1596
    %v1603 = vsel %vm1602, 1, 0
    %v1604 = vadd.s32 %v1600, %v1596
    %v1605 = vadd.s32 %v1601, %v1603
    %v1606 = vadd.s32 %v1605, %v1595
    %v1607 = vadd.s32 %v1606, %v1597
    %v1608 = vand.u32 %v1585, 65535
    %v1609 = vshrl.u32 %v1585, 16
    %v1610 = vand.u32 %v1580, 65535
    %v1611 = vshrl.u32 %v1580, 16
    %v1612 = vmul.u32 %v1608, %v1610
    %v1613 = vmul.u32 %v1608, %v1611
    %v1614 = vmul.u32 %v1609, %v1610
    %v1615 = vmul.u32 %v1609, %v1611
    %v1616 = vshll.u32 %v1613, 16
    %v1617 = vshrl.u32 %v1613, 16
    %v1618 = vshll.u32 %v1614, 16
    %v1619 = vshrl.u32 %v1614, 16
    %vm1620 = vc.u32 %v1612, %v1616
    %v1621 = vsel %vm1620, 1, 0
    %v1622 = vadd.s32 %v1612, %v1616
    %v1623 = vadd.s32 %v1615, %v1621
    %vm1624 = vc.u32 %v1622, %v1618
    %v1625 = vsel %vm1624, 1, 0
    %v1626 = vadd.s32 %v1622, %v1618
    %v1627 = vadd.s32 %v1623, %v1625
    %v1628 = vadd.s32 %v1627, %v1617
    %v1629 = vadd.s32 %v1628, %v1619
    %v1630 = vmul.u32 %v1585, %v1576
    %v1631 = vadd.s32 %v1607, %v1626
    %vm1632 = vc.u32 %v1607, %v1626
    %v1633 = vadd.s32 %v1629, 1
    %v1634 = vsel %vm1632, %v1633, %v1629
    %v1635 = vadd.s32 %v1630, %v1634
    %v1636 = vadd.s32 %v1635, 536870912
    %v1637 = vshrl.u32 %v1636, 30
    %v1638 = vshll.u32 %v1637, 30
    %v1639 = vsub.s32 %v1635, %v1638
    %vm1640 = vcmp.lt.s32.totalorder %v1639, 0
    %v1641 = vsub.s32 0, %v1639
    %v1642 = vsel %vm1640, %v1641, %v1639
    %v1643 = vclz %v1642
    %v1644 = vsub.s32 %v1643, 2
    %vm1645 = vcmp.gt.s32.totalorder 0, %v1644
    %v1646 = vsel %vm1645, 0, %v1644
    %v1647 = vsub.s32 32, %v1646
    %v1648 = vshll.u32 %v1639, %v1646
    %v1649 = vshrl.u32 %v1631, %v1647
    %v1650 = vor.u32 %v1648, %v1649
    %v1651 = vsub.s32 4294967266, %v1646
    %v1652 = vadd.s32 %v1651, 127
    %v1653 = vshll.u32 %v1652, 23
    %v1654 = vor.u32 4788187, %v1653
    %v1655 = vand.u32 2147483647, %v1654
    %v1657 = vcvt.s32.f32 %v1650
    %v1658 = vmul.f32 %v1657, %v1655
    %v1659 = vxor.u32 %v1658, 2147483648
    %v1660 = vsel %vm1539, %v1659, %v1658
    %v1661 = vsub.s32 4, %v1637
    %v1662 = vsel %vm1539, %v1661, %v1637
    %v1663 = vsel %vm1538, %v288, %v1660
    %v1664 = vsel %vm1538, 0, %v1662
    %v1665 = vmul.f32 %v1663, %v1663
    %v1666 = vmul.f32 %v1665, -0.001358992
    %v1667 = vadd.f32 %v1666, 0.041655596
    %v1668 = vmul.f32 %v1665, %v1667
    %v1669 = vadd.f32 %v1668, -0.4999988
    %v1670 = vmul.f32 %v1665, %v1669
    %v1671 = vadd.f32 1.0, %v1670
    %v1672 = vmul.f32 %v1663, %v1663
    %v1673 = vmul.f32 %v1672, -0.00019511016
    %v1674 = vadd.f32 %v1673, 0.008332121
    %v1675 = vmul.f32 %v1672, %v1674
    %v1676 = vadd.f32 %v1675, -0.16666654
    %v1677 = vmul.f32 %v1672, %v1676
    %v1678 = vadd.f32 %v1677, 1.0
    %v1679 = vmul.f32 %v1678, %v1663
    %vm1680 = vweird.f32 %v288
    %v1681 = vand.u32 %v1664, 3
    %vm1682 = vcmp.lt.s32.totalorder %v1681, 2
    %vm1683 = vcmp.eq.s32.totalorder %v1681, 0
    %v1684 = vxor.u32 %v1679, 2147483648
    %v1685 = vsel %vm1683, %v1671, %v1684
    %vm1686 = vcmp.eq.s32.totalorder %v1681, 2
    %v1687 = vxor.u32 %v1671, 2147483648
    %v1688 = vsel %vm1686, %v1687, %v1679
    %v1689 = vsel %vm1682, %v1685, %v1688
    %v1690 = vsel %vm1680, nan, %v1689
    %v1691 = vand.u32 2147483647, %v289
    %vm1692 = vcmp.le.f32.partialorder %v1691, 0.7853982
    %vm1693 = vcmp.lt.s32.totalorder %v289, 0
    %v1694 = vand.u32 %v289, 2139095040
    %v1695 = vshrl.u32 %v1694, 23
    %v1696 = vsub.s32 %v1695, 127
    %v1697 = vand.u32 2147483647, %v289
    %v1698 = vand.u32 %v1697, 8388607
    %v1699 = vor.u32 %v1698, 8388608
    %v1700 = vsub.s32 0, %v1699
    %v1701 = vadd.s32 %v1696, 1
    %vm1702 = vcmp.gt.s32.totalorder %v1701, 0
    %v1703 = vsel %vm1702, %v1701, 0
    %v1704 = vshrl.u32 %v1703, 5
    %v1705 = vand.u32 %v1703, 31
    %v1706 = vsub.s32 32, %v1705
    %v1707 = vshrl.u32 683565275, %v1706
    %v1708 = vshll.u32 683565275, %v1705
    %v1709 = vshrl.u32 2475754826, %v1706
    %v1710 = vor.u32 %v1708, %v1709
    %v1711 = vshll.u32 2475754826, %v1705
    %v1712 = vshrl.u32 2131351028, %v1706
    %v1713 = vor.u32 %v1711, %v1712
    %v1714 = vshll.u32 2131351028, %v1705
    %v1715 = vshrl.u32 2102212464, %v1706
    %v1716 = vor.u32 %v1714, %v1715
    %v1717 = vshll.u32 2102212464, %v1705
    %v1718 = vshrl.u32 920167782, %v1706
    %v1719 = vor.u32 %v1717, %v1718
    %v1720 = vshll.u32 920167782, %v1705
    %v1721 = vshrl.u32 1326507024, %v1706
    %v1722 = vor.u32 %v1720, %v1721
    %vm1723 = vcmp.lt.s32.totalorder %v1704, 1
    %vm1724 = vcmp.lt.s32.totalorder %v1704, 2
    %vm1725 = vcmp.lt.s32.totalorder %v1704, 3
    %vm1726 = vcmp.lt.s32.totalorder %v1704, 4
    %v1727 = vsel %vm1723, %v1707, %v1710
    %v1728 = vsel %vm1726, %v1716, 2102212464
    %v1729 = vsel %vm1725, %v1713, %v1728
    %v1730 = vsel %vm1724, %v1727, %v1729
    %v1731 = vsel %vm1723, %v1710, %v1713
    %v1732 = vsel %vm1726, %v1719, 920167782
    %v1733 = vsel %vm1725, %v1716, %v1732
    %v1734 = vsel %vm1724, %v1731, %v1733
    %v1735 = vsel %vm1723, %v1713, %v1716
    %v1736 = vsel %vm1726, %v1722, 1326507024
    %v1737 = vsel %vm1725, %v1719, %v1736
    %v1738 = vsel %vm1724, %v1735, %v1737
    %v1739 = vshll.u32 %v1699, 8
    %v1740 = vand.u32 %v1739, 65535
    %v1741 = vshrl.u32 %v1739, 16
    %v1742 = vand.u32 %v1738, 65535
    %v1743 = vshrl.u32 %v1738, 16
    %v1744 = vmul.u32 %v1740, %v1742
    %v1745 = vmul.u32 %v1740, %v1743
    %v1746 = vmul.u32 %v1741, %v1742
    %v1747 = vmul.u32 %v1741, %v1743
    %v1748 = vshll.u32 %v1745, 16
    %v1749 = vshrl.u32 %v1745, 16
    %v1750 = vshll.u32 %v1746, 16
    %v1751 = vshrl.u32 %v1746, 16
    %vm1752 = vc.u32 %v1744, %v1748
    %v1753 = vsel %vm1752, 1, 0
    %v1754 = vadd.s32 %v1744, %v1748
    %v1755 = vadd.s32 %v1747, %v1753
    %vm1756 = vc.u32 %v1754, %v1750
    %v1757 = vsel %vm1756, 1, 0
    %v1758 = vadd.s32 %v1754, %v1750
    %v1759 = vadd.s32 %v1755, %v1757
    %v1760 = vadd.s32 %v1759, %v1749
    %v1761 = vadd.s32 %v1760, %v1751
    %v1762 = vand.u32 %v1739, 65535
    %v1763 = vshrl.u32 %v1739, 16
    %v1764 = vand.u32 %v1734, 65535
    %v1765 = vshrl.u32 %v1734, 16
    %v1766 = vmul.u32 %v1762, %v1764
    %v1767 = vmul.u32 %v1762, %v1765
    %v1768 = vmul.u32 %v1763, %v1764
    %v1769 = vmul.u32 %v1763, %v1765
    %v1770 = vshll.u32 %v1767, 16
    %v1771 = vshrl.u32 %v1767, 16
    %v1772 = vshll.u32 %v1768, 16
    %v1773 = vshrl.u32 %v1768, 16
    %vm1774 = vc.u32 %v1766, %v1770
    %v1775 = vsel %vm1774, 1, 0
    %v1776 = vadd.s32 %v1766, %v1770
    %v1777 = vadd.s32 %v1769, %v1775
    %vm1778 = vc.u32 %v1776, %v1772
    %v1779 = vsel %vm1778, 1, 0
    %v1780 = vadd.s32 %v1776, %v1772
    %v1781 = vadd.s32 %v1777, %v1779
    %v1782 = vadd.s32 %v1781, %v1771
    %v1783 = vadd.s32 %v1782, %v1773
    %v1784 = vmul.u32 %v1739, %v1730
    %v1785 = vadd.s32 %v1761, %v1780
    %vm1786 = vc.u32 %v1761, %v1780
    %v1787 = vadd.s32 %v1783, 1
    %v1788 = vsel %vm1786, %v1787, %v1783
    %v1789 = vadd.s32 %v1784, %v1788
    %v1790 = vadd.s32 %v1789, 536870912
    %v1791 = vshrl.u32 %v1790, 30
    %v1792 = vshll.u32 %v1791, 30
    %v1793 = vsub.s32 %v1789, %v1792
    %vm1794 = vcmp.lt.s32.totalorder %v1793, 0
    %v1795 = vsub.s32 0, %v1793
    %v1796 = vsel %vm1794, %v1795, %v1793
    %v1797 = vclz %v1796
    %v1798 = vsub.s32 %v1797, 2
    %vm1799 = vcmp.gt.s32.totalorder 0, %v1798
    %v1800 = vsel %vm1799, 0, %v1798
    %v1801 = vsub.s32 32, %v1800
    %v1802 = vshll.u32 %v1793, %v1800
    %v1803 = vshrl.u32 %v1785, %v1801
    %v1804 = vor.u32 %v1802, %v1803
    %v1805 = vsub.s32 4294967266, %v1800
    %v1806 = vadd.s32 %v1805, 127
    %v1807 = vshll.u32 %v1806, 23
    %v1808 = vor.u32 4788187, %v1807
    %v1809 = vand.u32 2147483647, %v1808
    %v1811 = vcvt.s32.f32 %v1804
    %v1812 = vmul.f32 %v1811, %v1809
    %v1813 = vxor.u32 %v1812, 2147483648
    %v1814 = vsel %vm1693, %v1813, %v1812
    %v1815 = vsub.s32 4, %v1791
    %v1816 = vsel %vm1693, %v1815, %v1791
    %v1817 = vsel %vm1692, %v289, %v1814
    %v1818 = vsel %vm1692, 0, %v1816
    %v1819 = vmul.f32 %v1817, %v1817
    %v1820 = vmul.f32 %v1819, -0.001358992
    %v1821 = vadd.f32 %v1820, 0.041655596
    %v1822 = vmul.f32 %v1819, %v1821
    %v1823 = vadd.f32 %v1822, -0.4999988
    %v1824 = vmul.f32 %v1819, %v1823
    %v1825 = vadd.f32 1.0, %v1824
    %v1826 = vmul.f32 %v1817, %v1817
    %v1827 = vmul.f32 %v1826, -0.00019511016
    %v1828 = vadd.f32 %v1827, 0.008332121
    %v1829 = vmul.f32 %v1826, %v1828
    %v1830 = vadd.f32 %v1829, -0.16666654
    %v1831 = vmul.f32 %v1826, %v1830
    %v1832 = vadd.f32 %v1831, 1.0
    %v1833 = vmul.f32 %v1832, %v1817
    %vm1834 = vweird.f32 %v289
    %v1835 = vand.u32 %v1818, 3
    %vm1836 = vcmp.lt.s32.totalorder %v1835, 2
    %vm1837 = vcmp.eq.s32.totalorder %v1835, 0
    %v1838 = vxor.u32 %v1833, 2147483648
    %v1839 = vsel %vm1837, %v1825, %v1838
    %vm1840 = vcmp.eq.s32.totalorder %v1835, 2
    %v1841 = vxor.u32 %v1825, 2147483648
    %v1842 = vsel %vm1840, %v1841, %v1833
    %v1843 = vsel %vm1836, %v1839, %v1842
    %v1844 = vsel %vm1834, nan, %v1843
    %v1845 = vand.u32 2147483647, %v290
    %vm1846 = vcmp.le.f32.partialorder %v1845, 0.7853982
    %vm1847 = vcmp.lt.s32.totalorder %v290, 0
    %v1848 = vand.u32 %v290, 2139095040
    %v1849 = vshrl.u32 %v1848, 23
    %v1850 = vsub.s32 %v1849, 127
    %v1851 = vand.u32 2147483647, %v290
    %v1852 = vand.u32 %v1851, 8388607
    %v1853 = vor.u32 %v1852, 8388608
    %v1854 = vsub.s32 0, %v1853
    %v1855 = vadd.s32 %v1850, 1
    %vm1856 = vcmp.gt.s32.totalorder %v1855, 0
    %v1857 = vsel %vm1856, %v1855, 0
    %v1858 = vshrl.u32 %v1857, 5
    %v1859 = vand.u32 %v1857, 31
    %v1860 = vsub.s32 32, %v1859
    %v1861 = vshrl.u32 683565275, %v1860
    %v1862 = vshll.u32 683565275, %v1859
    %v1863 = vshrl.u32 2475754826, %v1860
    %v1864 = vor.u32 %v1862, %v1863
    %v1865 = vshll.u32 2475754826, %v1859
    %v1866 = vshrl.u32 2131351028, %v1860
    %v1867 = vor.u32 %v1865, %v1866
    %v1868 = vshll.u32 2131351028, %v1859
    %v1869 = vshrl.u32 2102212464, %v1860
    %v1870 = vor.u32 %v1868, %v1869
    %v1871 = vshll.u32 2102212464, %v1859
    %v1872 = vshrl.u32 920167782, %v1860
    %v1873 = vor.u32 %v1871, %v1872
    %v1874 = vshll.u32 920167782, %v1859
    %v1875 = vshrl.u32 1326507024, %v1860
    %v1876 = vor.u32 %v1874, %v1875
    %vm1877 = vcmp.lt.s32.totalorder %v1858, 1
    %vm1878 = vcmp.lt.s32.totalorder %v1858, 2
    %vm1879 = vcmp.lt.s32.totalorder %v1858, 3
    %vm1880 = vcmp.lt.s32.totalorder %v1858, 4
    %v1881 = vsel %vm1877, %v1861, %v1864
    %v1882 = vsel %vm1880, %v1870, 2102212464
    %v1883 = vsel %vm1879, %v1867, %v1882
    %v1884 = vsel %vm1878, %v1881, %v1883
    %v1885 = vsel %vm1877, %v1864, %v1867
    %v1886 = vsel %vm1880, %v1873, 920167782
    %v1887 = vsel %vm1879, %v1870, %v1886
    %v1888 = vsel %vm1878, %v1885, %v1887
    %v1889 = vsel %vm1877, %v1867, %v1870
    %v1890 = vsel %vm1880, %v1876, 1326507024
    %v1891 = vsel %vm1879, %v1873, %v1890
    %v1892 = vsel %vm1878, %v1889, %v1891
    %v1893 = vshll.u32 %v1853, 8
    %v1894 = vand.u32 %v1893, 65535
    %v1895 = vshrl.u32 %v1893, 16
    %v1896 = vand.u32 %v1892, 65535
    %v1897 = vshrl.u32 %v1892, 16
    %v1898 = vmul.u32 %v1894, %v1896
    %v1899 = vmul.u32 %v1894, %v1897
    %v1900 = vmul.u32 %v1895, %v1896
    %v1901 = vmul.u32 %v1895, %v1897
    %v1902 = vshll.u32 %v1899, 16
    %v1903 = vshrl.u32 %v1899, 16
    %v1904 = vshll.u32 %v1900, 16
    %v1905 = vshrl.u32 %v1900, 16
    %vm1906 = vc.u32 %v1898, %v1902
    %v1907 = vsel %vm1906, 1, 0
    %v1908 = vadd.s32 %v1898, %v1902
    %v1909 = vadd.s32 %v1901, %v1907
    %vm1910 = vc.u32 %v1908, %v1904
    %v1911 = vsel %vm1910, 1, 0
    %v1912 = vadd.s32 %v1908, %v1904
    %v1913 = vadd.s32 %v1909, %v1911
    %v1914 = vadd.s32 %v1913, %v1903
    %v1915 = vadd.s32 %v1914, %v1905
    %v1916 = vand.u32 %v1893, 65535
    %v1917 = vshrl.u32 %v1893, 16
    %v1918 = vand.u32 %v1888, 65535
    %v1919 = vshrl.u32 %v1888, 16
    %v1920 = vmul.u32 %v1916, %v1918
    %v1921 = vmul.u32 %v1916, %v1919
    %v1922 = vmul.u32 %v1917, %v1918
    %v1923 = vmul.u32 %v1917, %v1919
    %v1924 = vshll.u32 %v1921, 16
    %v1925 = vshrl.u32 %v1921, 16
    %v1926 = vshll.u32 %v1922, 16
    %v1927 = vshrl.u32 %v1922, 16
    %vm1928 = vc.u32 %v1920, %v1924
    %v1929 = vsel %vm1928, 1, 0
    %v1930 = vadd.s32 %v1920, %v1924
    %v1931 = vadd.s32 %v1923, %v1929
    %vm1932 = vc.u32 %v1930, %v1926
    %v1933 = vsel %vm1932, 1, 0
    %v1934 = vadd.s32 %v1930, %v1926
    %v1935 = vadd.s32 %v1931, %v1933
    %v1936 = vadd.s32 %v1935, %v1925
    %v1937 = vadd.s32 %v1936, %v1927
    %v1938 = vmul.u32 %v1893, %v1884
    %v1939 = vadd.s32 %v1915, %v1934
    %vm1940 = vc.u32 %v1915, %v1934
    %v1941 = vadd.s32 %v1937, 1
    %v1942 = vsel %vm1940, %v1941, %v1937
    %v1943 = vadd.s32 %v1938, %v1942
    %v1944 = vadd.s32 %v1943, 536870912
    %v1945 = vshrl.u32 %v1944, 30
    %v1946 = vshll.u32 %v1945, 30
    %v1947 = vsub.s32 %v1943, %v1946
    %vm1948 = vcmp.lt.s32.totalorder %v1947, 0
    %v1949 = vsub.s32 0, %v1947
    %v1950 = vsel %vm1948, %v1949, %v1947
    %v1951 = vclz %v1950
    %v1952 = vsub.s32 %v1951, 2
    %vm1953 = vcmp.gt.s32.totalorder 0, %v1952
    %v1954 = vsel %vm1953, 0, %v1952
    %v1955 = vsub.s32 32, %v1954
    %v1956 = vshll.u32 %v1947, %v1954
    %v1957 = vshrl.u32 %v1939, %v1955
    %v1958 = vor.u32 %v1956, %v1957
    %v1959 = vsub.s32 4294967266, %v1954
    %v1960 = vadd.s32 %v1959, 127
    %v1961 = vshll.u32 %v1960, 23
    %v1962 = vor.u32 4788187, %v1961
    %v1963 = vand.u32 2147483647, %v1962
    %v1965 = vcvt.s32.f32 %v1958
    %v1966 = vmul.f32 %v1965, %v1963
    %v1967 = vxor.u32 %v1966, 2147483648
    %v1968 = vsel %vm1847, %v1967, %v1966
    %v1969 = vsub.s32 4, %v1945
    %v1970 = vsel %vm1847, %v1969, %v1945
    %v1971 = vsel %vm1846, %v290, %v1968
    %v1972 = vsel %vm1846, 0, %v1970
    %v1973 = vmul.f32 %v1971, %v1971
    %v1974 = vmul.f32 %v1973, -0.001358992
    %v1975 = vadd.f32 %v1974, 0.041655596
    %v1976 = vmul.f32 %v1973, %v1975
    %v1977 = vadd.f32 %v1976, -0.4999988
    %v1978 = vmul.f32 %v1973, %v1977
    %v1979 = vadd.f32 1.0, %v1978
    %v1980 = vmul.f32 %v1971, %v1971
    %v1981 = vmul.f32 %v1980, -0.00019511016
    %v1982 = vadd.f32 %v1981, 0.008332121
    %v1983 = vmul.f32 %v1980, %v1982
    %v1984 = vadd.f32 %v1983, -0.16666654
    %v1985 = vmul.f32 %v1980, %v1984
    %v1986 = vadd.f32 %v1985, 1.0
    %v1987 = vmul.f32 %v1986, %v1971
    %vm1988 = vweird.f32 %v290
    %v1989 = vand.u32 %v1972, 3
    %vm1990 = vcmp.lt.s32.totalorder %v1989, 2
    %vm1991 = vcmp.eq.s32.totalorder %v1989, 0
    %v1992 = vxor.u32 %v1987, 2147483648
    %v1993 = vsel %vm1991, %v1979, %v1992
    %vm1994 = vcmp.eq.s32.totalorder %v1989, 2
    %v1995 = vxor.u32 %v1979, 2147483648
    %v1996 = vsel %vm1994, %v1995, %v1987
    %v1997 = vsel %vm1990, %v1993, %v1996
    %v1998 = vsel %vm1988, nan, %v1997
    %v1999 = vand.u32 2147483647, %v291
    %vm2000 = vcmp.le.f32.partialorder %v1999, 0.7853982
    %vm2001 = vcmp.lt.s32.totalorder %v291, 0
    %v2002 = vand.u32 %v291, 2139095040
    %v2003 = vshrl.u32 %v2002, 23
    %v2004 = vsub.s32 %v2003, 127
    %v2005 = vand.u32 2147483647, %v291
    %v2006 = vand.u32 %v2005, 8388607
    %v2007 = vor.u32 %v2006, 8388608
    %v2008 = vsub.s32 0, %v2007
    %v2009 = vadd.s32 %v2004, 1
    %vm2010 = vcmp.gt.s32.totalorder %v2009, 0
    %v2011 = vsel %vm2010, %v2009, 0
    %v2012 = vshrl.u32 %v2011, 5
    %v2013 = vand.u32 %v2011, 31
    %v2014 = vsub.s32 32, %v2013
    %v2015 = vshrl.u32 683565275, %v2014
    %v2016 = vshll.u32 683565275, %v2013
    %v2017 = vshrl.u32 2475754826, %v2014
    %v2018 = vor.u32 %v2016, %v2017
    %v2019 = vshll.u32 2475754826, %v2013
    %v2020 = vshrl.u32 2131351028, %v2014
    %v2021 = vor.u32 %v2019, %v2020
    %v2022 = vshll.u32 2131351028, %v2013
    %v2023 = vshrl.u32 2102212464, %v2014
    %v2024 = vor.u32 %v2022, %v2023
    %v2025 = vshll.u32 2102212464, %v2013
    %v2026 = vshrl.u32 920167782, %v2014
    %v2027 = vor.u32 %v2025, %v2026
    %v2028 = vshll.u32 920167782, %v2013
    %v2029 = vshrl.u32 1326507024, %v2014
    %v2030 = vor.u32 %v2028, %v2029
    %vm2031 = vcmp.lt.s32.totalorder %v2012, 1
    %vm2032 = vcmp.lt.s32.totalorder %v2012, 2
    %vm2033 = vcmp.lt.s32.totalorder %v2012, 3
    %vm2034 = vcmp.lt.s32.totalorder %v2012, 4
    %v2035 = vsel %vm2031, %v2015, %v2018
    %v2036 = vsel %vm2034, %v2024, 2102212464
    %v2037 = vsel %vm2033, %v2021, %v2036
    %v2038 = vsel %vm2032, %v2035, %v2037
    %v2039 = vsel %vm2031, %v2018, %v2021
    %v2040 = vsel %vm2034, %v2027, 920167782
    %v2041 = vsel %vm2033, %v2024, %v2040
    %v2042 = vsel %vm2032, %v2039, %v2041
    %v2043 = vsel %vm2031, %v2021, %v2024
    %v2044 = vsel %vm2034, %v2030, 1326507024
    %v2045 = vsel %vm2033, %v2027, %v2044
    %v2046 = vsel %vm2032, %v2043, %v2045
    %v2047 = vshll.u32 %v2007, 8
    %v2048 = vand.u32 %v2047, 65535
    %v2049 = vshrl.u32 %v2047, 16
    %v2050 = vand.u32 %v2046, 65535
    %v2051 = vshrl.u32 %v2046, 16
    %v2052 = vmul.u32 %v2048, %v2050
    %v2053 = vmul.u32 %v2048, %v2051
    %v2054 = vmul.u32 %v2049, %v2050
    %v2055 = vmul.u32 %v2049, %v2051
    %v2056 = vshll.u32 %v2053, 16
    %v2057 = vshrl.u32 %v2053, 16
    %v2058 = vshll.u32 %v2054, 16
    %v2059 = vshrl.u32 %v2054, 16
    %vm2060 = vc.u32 %v2052, %v2056
    %v2061 = vsel %vm2060, 1, 0
    %v2062 = vadd.s32 %v2052, %v2056
    %v2063 = vadd.s32 %v2055, %v2061
    %vm2064 = vc.u32 %v2062, %v2058
    %v2065 = vsel %vm2064, 1, 0
    %v2066 = vadd.s32 %v2062, %v2058
    %v2067 = vadd.s32 %v2063, %v2065
    %v2068 = vadd.s32 %v2067, %v2057
    %v2069 = vadd.s32 %v2068, %v2059
    %v2070 = vand.u32 %v2047, 65535
    %v2071 = vshrl.u32 %v2047, 16
    %v2072 = vand.u32 %v2042, 65535
    %v2073 = vshrl.u32 %v2042, 16
    %v2074 = vmul.u32 %v2070, %v2072
    %v2075 = vmul.u32 %v2070, %v2073
    %v2076 = vmul.u32 %v2071, %v2072
    %v2077 = vmul.u32 %v2071, %v2073
    %v2078 = vshll.u32 %v2075, 16
    %v2079 = vshrl.u32 %v2075, 16
    %v2080 = vshll.u32 %v2076, 16
    %v2081 = vshrl.u32 %v2076, 16
    %vm2082 = vc.u32 %v2074, %v2078
    %v2083 = vsel %vm2082, 1, 0
    %v2084 = vadd.s32 %v2074, %v2078
    %v2085 = vadd.s32 %v2077, %v2083
    %vm2086 = vc.u32 %v2084, %v2080
    %v2087 = vsel %vm2086, 1, 0
    %v2088 = vadd.s32 %v2084, %v2080
    %v2089 = vadd.s32 %v2085, %v2087
    %v2090 = vadd.s32 %v2089, %v2079
    %v2091 = vadd.s32 %v2090, %v2081
    %v2092 = vmul.u32 %v2047, %v2038
    %v2093 = vadd.s32 %v2069, %v2088
    %vm2094 = vc.u32 %v2069, %v2088
    %v2095 = vadd.s32 %v2091, 1
    %v2096 = vsel %vm2094, %v2095, %v2091
    %v2097 = vadd.s32 %v2092, %v2096
    %v2098 = vadd.s32 %v2097, 536870912
    %v2099 = vshrl.u32 %v2098, 30
    %v2100 = vshll.u32 %v2099, 30
    %v2101 = vsub.s32 %v2097, %v2100
    %vm2102 = vcmp.lt.s32.totalorder %v2101, 0
    %v2103 = vsub.s32 0, %v2101
    %v2104 = vsel %vm2102, %v2103, %v2101
    %v2105 = vclz %v2104
    %v2106 = vsub.s32 %v2105, 2
    %vm2107 = vcmp.gt.s32.totalorder 0, %v2106
    %v2108 = vsel %vm2107, 0, %v2106
    %v2109 = vsub.s32 32, %v2108
    %v2110 = vshll.u32 %v2101, %v2108
    %v2111 = vshrl.u32 %v2093, %v2109
    %v2112 = vor.u32 %v2110, %v2111
    %v2113 = vsub.s32 4294967266, %v2108
    %v2114 = vadd.s32 %v2113, 127
    %v2115 = vshll.u32 %v2114, 23
    %v2116 = vor.u32 4788187, %v2115
    %v2117 = vand.u32 2147483647, %v2116
    %v2119 = vcvt.s32.f32 %v2112
    %v2120 = vmul.f32 %v2119, %v2117
    %v2121 = vxor.u32 %v2120, 2147483648
    %v2122 = vsel %vm2001, %v2121, %v2120
    %v2123 = vsub.s32 4, %v2099
    %v2124 = vsel %vm2001, %v2123, %v2099
    %v2125 = vsel %vm2000, %v291, %v2122
    %v2126 = vsel %vm2000, 0, %v2124
    %v2127 = vmul.f32 %v2125, %v2125
    %v2128 = vmul.f32 %v2127, -0.001358992
    %v2129 = vadd.f32 %v2128, 0.041655596
    %v2130 = vmul.f32 %v2127, %v2129
    %v2131 = vadd.f32 %v2130, -0.4999988
    %v2132 = vmul.f32 %v2127, %v2131
    %v2133 = vadd.f32 1.0, %v2132
    %v2134 = vmul.f32 %v2125, %v2125
    %v2135 = vmul.f32 %v2134, -0.00019511016
    %v2136 = vadd.f32 %v2135, 0.008332121
    %v2137 = vmul.f32 %v2134, %v2136
    %v2138 = vadd.f32 %v2137, -0.16666654
    %v2139 = vmul.f32 %v2134, %v2138
    %v2140 = vadd.f32 %v2139, 1.0
    %v2141 = vmul.f32 %v2140, %v2125
    %vm2142 = vweird.f32 %v291
    %v2143 = vand.u32 %v2126, 3
    %vm2144 = vcmp.lt.s32.totalorder %v2143, 2
    %vm2145 = vcmp.eq.s32.totalorder %v2143, 0
    %v2146 = vxor.u32 %v2141, 2147483648
    %v2147 = vsel %vm2145, %v2133, %v2146
    %vm2148 = vcmp.eq.s32.totalorder %v2143, 2
    %v2149 = vxor.u32 %v2133, 2147483648
    %v2150 = vsel %vm2148, %v2149, %v2141
    %v2151 = vsel %vm2144, %v2147, %v2150
    %v2152 = vsel %vm2142, nan, %v2151
    %v2153 = vand.u32 2147483647, %v292
    %vm2154 = vcmp.le.f32.partialorder %v2153, 0.7853982
    %vm2155 = vcmp.lt.s32.totalorder %v292, 0
    %v2156 = vand.u32 %v292, 2139095040
    %v2157 = vshrl.u32 %v2156, 23
    %v2158 = vsub.s32 %v2157, 127
    %v2159 = vand.u32 2147483647, %v292
    %v2160 = vand.u32 %v2159, 8388607
    %v2161 = vor.u32 %v2160, 8388608
    %v2162 = vsub.s32 0, %v2161
    %v2163 = vadd.s32 %v2158, 1
    %vm2164 = vcmp.gt.s32.totalorder %v2163, 0
    %v2165 = vsel %vm2164, %v2163, 0
    %v2166 = vshrl.u32 %v2165, 5
    %v2167 = vand.u32 %v2165, 31
    %v2168 = vsub.s32 32, %v2167
    %v2169 = vshrl.u32 683565275, %v2168
    %v2170 = vshll.u32 683565275, %v2167
    %v2171 = vshrl.u32 2475754826, %v2168
    %v2172 = vor.u32 %v2170, %v2171
    %v2173 = vshll.u32 2475754826, %v2167
    %v2174 = vshrl.u32 2131351028, %v2168
    %v2175 = vor.u32 %v2173, %v2174
    %v2176 = vshll.u32 2131351028, %v2167
    %v2177 = vshrl.u32 2102212464, %v2168
    %v2178 = vor.u32 %v2176, %v2177
    %v2179 = vshll.u32 2102212464, %v2167
    %v2180 = vshrl.u32 920167782, %v2168
    %v2181 = vor.u32 %v2179, %v2180
    %v2182 = vshll.u32 920167782, %v2167
    %v2183 = vshrl.u32 1326507024, %v2168
    %v2184 = vor.u32 %v2182, %v2183
    %vm2185 = vcmp.lt.s32.totalorder %v2166, 1
    %vm2186 = vcmp.lt.s32.totalorder %v2166, 2
    %vm2187 = vcmp.lt.s32.totalorder %v2166, 3
    %vm2188 = vcmp.lt.s32.totalorder %v2166, 4
    %v2189 = vsel %vm2185, %v2169, %v2172
    %v2190 = vsel %vm2188, %v2178, 2102212464
    %v2191 = vsel %vm2187, %v2175, %v2190
    %v2192 = vsel %vm2186, %v2189, %v2191
    %v2193 = vsel %vm2185, %v2172, %v2175
    %v2194 = vsel %vm2188, %v2181, 920167782
    %v2195 = vsel %vm2187, %v2178, %v2194
    %v2196 = vsel %vm2186, %v2193, %v2195
    %v2197 = vsel %vm2185, %v2175, %v2178
    %v2198 = vsel %vm2188, %v2184, 1326507024
    %v2199 = vsel %vm2187, %v2181, %v2198
    %v2200 = vsel %vm2186, %v2197, %v2199
    %v2201 = vshll.u32 %v2161, 8
    %v2202 = vand.u32 %v2201, 65535
    %v2203 = vshrl.u32 %v2201, 16
    %v2204 = vand.u32 %v2200, 65535
    %v2205 = vshrl.u32 %v2200, 16
    %v2206 = vmul.u32 %v2202, %v2204
    %v2207 = vmul.u32 %v2202, %v2205
    %v2208 = vmul.u32 %v2203, %v2204
    %v2209 = vmul.u32 %v2203, %v2205
    %v2210 = vshll.u32 %v2207, 16
    %v2211 = vshrl.u32 %v2207, 16
    %v2212 = vshll.u32 %v2208, 16
    %v2213 = vshrl.u32 %v2208, 16
    %vm2214 = vc.u32 %v2206, %v2210
    %v2215 = vsel %vm2214, 1, 0
    %v2216 = vadd.s32 %v2206, %v2210
    %v2217 = vadd.s32 %v2209, %v2215
    %vm2218 = vc.u32 %v2216, %v2212
    %v2219 = vsel %vm2218, 1, 0
    %v2220 = vadd.s32 %v2216, %v2212
    %v2221 = vadd.s32 %v2217, %v2219
    %v2222 = vadd.s32 %v2221, %v2211
    %v2223 = vadd.s32 %v2222, %v2213
    %v2224 = vand.u32 %v2201, 65535
    %v2225 = vshrl.u32 %v2201, 16
    %v2226 = vand.u32 %v2196, 65535
    %v2227 = vshrl.u32 %v2196, 16
    %v2228 = vmul.u32 %v2224, %v2226
    %v2229 = vmul.u32 %v2224, %v2227
    %v2230 = vmul.u32 %v2225, %v2226
    %v2231 = vmul.u32 %v2225, %v2227
    %v2232 = vshll.u32 %v2229, 16
    %v2233 = vshrl.u32 %v2229, 16
    %v2234 = vshll.u32 %v2230, 16
    %v2235 = vshrl.u32 %v2230, 16
    %vm2236 = vc.u32 %v2228, %v2232
    %v2237 = vsel %vm2236, 1, 0
    %v2238 = vadd.s32 %v2228, %v2232
    %v2239 = vadd.s32 %v2231, %v2237
    %vm2240 = vc.u32 %v2238, %v2234
    %v2241 = vsel %vm2240, 1, 0
    %v2242 = vadd.s32 %v2238, %v2234
    %v2243 = vadd.s32 %v2239, %v2241
    %v2244 = vadd.s32 %v2243, %v2233
    %v2245 = vadd.s32 %v2244, %v2235
    %v2246 = vmul.u32 %v2201, %v2192
    %v2247 = vadd.s32 %v2223, %v2242
    %vm2248 = vc.u32 %v2223, %v2242
    %v2249 = vadd.s32 %v2245, 1
    %v2250 = vsel %vm2248, %v2249, %v2245
    %v2251 = vadd.s32 %v2246, %v2250
    %v2252 = vadd.s32 %v2251, 536870912
    %v2253 = vshrl.u32 %v2252, 30
    %v2254 = vshll.u32 %v2253, 30
    %v2255 = vsub.s32 %v2251, %v2254
    %vm2256 = vcmp.lt.s32.totalorder %v2255, 0
    %v2257 = vsub.s32 0, %v2255
    %v2258 = vsel %vm2256, %v2257, %v2255
    %v2259 = vclz %v2258
    %v2260 = vsub.s32 %v2259, 2
    %vm2261 = vcmp.gt.s32.totalorder 0, %v2260
    %v2262 = vsel %vm2261, 0, %v2260
    %v2263 = vsub.s32 32, %v2262
    %v2264 = vshll.u32 %v2255, %v2262
    %v2265 = vshrl.u32 %v2247, %v2263
    %v2266 = vor.u32 %v2264, %v2265
    %v2267 = vsub.s32 4294967266, %v2262
    %v2268 = vadd.s32 %v2267, 127
    %v2269 = vshll.u32 %v2268, 23
    %v2270 = vor.u32 4788187, %v2269
    %v2271 = vand.u32 2147483647, %v2270
    %v2273 = vcvt.s32.f32 %v2266
    %v2274 = vmul.f32 %v2273, %v2271
    %v2275 = vxor.u32 %v2274, 2147483648
    %v2276 = vsel %vm2155, %v2275, %v2274
    %v2277 = vsub.s32 4, %v2253
    %v2278 = vsel %vm2155, %v2277, %v2253
    %v2279 = vsel %vm2154, %v292, %v2276
    %v2280 = vsel %vm2154, 0, %v2278
    %v2281 = vmul.f32 %v2279, %v2279
    %v2282 = vmul.f32 %v2281, -0.001358992
    %v2283 = vadd.f32 %v2282, 0.041655596
    %v2284 = vmul.f32 %v2281, %v2283
    %v2285 = vadd.f32 %v2284, -0.4999988
    %v2286 = vmul.f32 %v2281, %v2285
    %v2287 = vadd.f32 1.0, %v2286
    %v2288 = vmul.f32 %v2279, %v2279
    %v2289 = vmul.f32 %v2288, -0.00019511016
    %v2290 = vadd.f32 %v2289, 0.008332121
    %v2291 = vmul.f32 %v2288, %v2290
    %v2292 = vadd.f32 %v2291, -0.16666654
    %v2293 = vmul.f32 %v2288, %v2292
    %v2294 = vadd.f32 %v2293, 1.0
    %v2295 = vmul.f32 %v2294, %v2279
    %vm2296 = vweird.f32 %v292
    %v2297 = vand.u32 %v2280, 3
    %vm2298 = vcmp.lt.s32.totalorder %v2297, 2
    %vm2299 = vcmp.eq.s32.totalorder %v2297, 0
    %v2300 = vxor.u32 %v2295, 2147483648
    %v2301 = vsel %vm2299, %v2287, %v2300
    %vm2302 = vcmp.eq.s32.totalorder %v2297, 2
    %v2303 = vxor.u32 %v2287, 2147483648
    %v2304 = vsel %vm2302, %v2303, %v2295
    %v2305 = vsel %vm2298, %v2301, %v2304
    %v2306 = vsel %vm2296, nan, %v2305
    %v2307 = vand.u32 2147483647, %v293
    %vm2308 = vcmp.le.f32.partialorder %v2307, 0.7853982
    %vm2309 = vcmp.lt.s32.totalorder %v293, 0
    %v2310 = vand.u32 %v293, 2139095040
    %v2311 = vshrl.u32 %v2310, 23
    %v2312 = vsub.s32 %v2311, 127
    %v2313 = vand.u32 2147483647, %v293
    %v2314 = vand.u32 %v2313, 8388607
    %v2315 = vor.u32 %v2314, 8388608
    %v2316 = vsub.s32 0, %v2315
    %v2317 = vadd.s32 %v2312, 1
    %vm2318 = vcmp.gt.s32.totalorder %v2317, 0
    %v2319 = vsel %vm2318, %v2317, 0
    %v2320 = vshrl.u32 %v2319, 5
    %v2321 = vand.u32 %v2319, 31
    %v2322 = vsub.s32 32, %v2321
    %v2323 = vshrl.u32 683565275, %v2322
    %v2324 = vshll.u32 683565275, %v2321
    %v2325 = vshrl.u32 2475754826, %v2322
    %v2326 = vor.u32 %v2324, %v2325
    %v2327 = vshll.u32 2475754826, %v2321
    %v2328 = vshrl.u32 2131351028, %v2322
    %v2329 = vor.u32 %v2327, %v2328
    %v2330 = vshll.u32 2131351028, %v2321
    %v2331 = vshrl.u32 2102212464, %v2322
    %v2332 = vor.u32 %v2330, %v2331
    %v2333 = vshll.u32 2102212464, %v2321
    %v2334 = vshrl.u32 920167782, %v2322
    %v2335 = vor.u32 %v2333, %v2334
    %v2336 = vshll.u32 920167782, %v2321
    %v2337 = vshrl.u32 1326507024, %v2322
    %v2338 = vor.u32 %v2336, %v2337
    %vm2339 = vcmp.lt.s32.totalorder %v2320, 1
    %vm2340 = vcmp.lt.s32.totalorder %v2320, 2
    %vm2341 = vcmp.lt.s32.totalorder %v2320, 3
    %vm2342 = vcmp.lt.s32.totalorder %v2320, 4
    %v2343 = vsel %vm2339, %v2323, %v2326
    %v2344 = vsel %vm2342, %v2332, 2102212464
    %v2345 = vsel %vm2341, %v2329, %v2344
    %v2346 = vsel %vm2340, %v2343, %v2345
    %v2347 = vsel %vm2339, %v2326, %v2329
    %v2348 = vsel %vm2342, %v2335, 920167782
    %v2349 = vsel %vm2341, %v2332, %v2348
    %v2350 = vsel %vm2340, %v2347, %v2349
    %v2351 = vsel %vm2339, %v2329, %v2332
    %v2352 = vsel %vm2342, %v2338, 1326507024
    %v2353 = vsel %vm2341, %v2335, %v2352
    %v2354 = vsel %vm2340, %v2351, %v2353
    %v2355 = vshll.u32 %v2315, 8
    %v2356 = vand.u32 %v2355, 65535
    %v2357 = vshrl.u32 %v2355, 16
    %v2358 = vand.u32 %v2354, 65535
    %v2359 = vshrl.u32 %v2354, 16
    %v2360 = vmul.u32 %v2356, %v2358
    %v2361 = vmul.u32 %v2356, %v2359
    %v2362 = vmul.u32 %v2357, %v2358
    %v2363 = vmul.u32 %v2357, %v2359
    %v2364 = vshll.u32 %v2361, 16
    %v2365 = vshrl.u32 %v2361, 16
    %v2366 = vshll.u32 %v2362, 16
    %v2367 = vshrl.u32 %v2362, 16
    %vm2368 = vc.u32 %v2360, %v2364
    %v2369 = vsel %vm2368, 1, 0
    %v2370 = vadd.s32 %v2360, %v2364
    %v2371 = vadd.s32 %v2363, %v2369
    %vm2372 = vc.u32 %v2370, %v2366
    %v2373 = vsel %vm2372, 1, 0
    %v2374 = vadd.s32 %v2370, %v2366
    %v2375 = vadd.s32 %v2371, %v2373
    %v2376 = vadd.s32 %v2375, %v2365
    %v2377 = vadd.s32 %v2376, %v2367
    %v2378 = vand.u32 %v2355, 65535
    %v2379 = vshrl.u32 %v2355, 16
    %v2380 = vand.u32 %v2350, 65535
    %v2381 = vshrl.u32 %v2350, 16
    %v2382 = vmul.u32 %v2378, %v2380
    %v2383 = vmul.u32 %v2378, %v2381
    %v2384 = vmul.u32 %v2379, %v2380
    %v2385 = vmul.u32 %v2379, %v2381
    %v2386 = vshll.u32 %v2383, 16
    %v2387 = vshrl.u32 %v2383, 16
    %v2388 = vshll.u32 %v2384, 16
    %v2389 = vshrl.u32 %v2384, 16
    %vm2390 = vc.u32 %v2382, %v2386
    %v2391 = vsel %vm2390, 1, 0
    %v2392 = vadd.s32 %v2382, %v2386
    %v2393 = vadd.s32 %v2385, %v2391
    %vm2394 = vc.u32 %v2392, %v2388
    %v2395 = vsel %vm2394, 1, 0
    %v2396 = vadd.s32 %v2392, %v2388
    %v2397 = vadd.s32 %v2393, %v2395
    %v2398 = vadd.s32 %v2397, %v2387
    %v2399 = vadd.s32 %v2398, %v2389
    %v2400 = vmul.u32 %v2355, %v2346
    %v2401 = vadd.s32 %v2377, %v2396
    %vm2402 = vc.u32 %v2377, %v2396
    %v2403 = vadd.s32 %v2399, 1
    %v2404 = vsel %vm2402, %v2403, %v2399
    %v2405 = vadd.s32 %v2400, %v2404
    %v2406 = vadd.s32 %v2405, 536870912
    %v2407 = vshrl.u32 %v2406, 30
    %v2408 = vshll.u32 %v2407, 30
    %v2409 = vsub.s32 %v2405, %v2408
    %vm2410 = vcmp.lt.s32.totalorder %v2409, 0
    %v2411 = vsub.s32 0, %v2409
    %v2412 = vsel %vm2410, %v2411, %v2409
    %v2413 = vclz %v2412
    %v2414 = vsub.s32 %v2413, 2
    %vm2415 = vcmp.gt.s32.totalorder 0, %v2414
    %v2416 = vsel %vm2415, 0, %v2414
    %v2417 = vsub.s32 32, %v2416
    %v2418 = vshll.u32 %v2409, %v2416
    %v2419 = vshrl.u32 %v2401, %v2417
    %v2420 = vor.u32 %v2418, %v2419
    %v2421 = vsub.s32 4294967266, %v2416
    %v2422 = vadd.s32 %v2421, 127
    %v2423 = vshll.u32 %v2422, 23
    %v2424 = vor.u32 4788187, %v2423
    %v2425 = vand.u32 2147483647, %v2424
    %v2427 = vcvt.s32.f32 %v2420
    %v2428 = vmul.f32 %v2427, %v2425
    %v2429 = vxor.u32 %v2428, 2147483648
    %v2430 = vsel %vm2309, %v2429, %v2428
    %v2431 = vsub.s32 4, %v2407
    %v2432 = vsel %vm2309, %v2431, %v2407
    %v2433 = vsel %vm2308, %v293, %v2430
    %v2434 = vsel %vm2308, 0, %v2432
    %v2435 = vmul.f32 %v2433, %v2433
    %v2436 = vmul.f32 %v2435, -0.001358992
    %v2437 = vadd.f32 %v2436, 0.041655596
    %v2438 = vmul.f32 %v2435, %v2437
    %v2439 = vadd.f32 %v2438, -0.4999988
    %v2440 = vmul.f32 %v2435, %v2439
    %v2441 = vadd.f32 1.0, %v2440
    %v2442 = vmul.f32 %v2433, %v2433
    %v2443 = vmul.f32 %v2442, -0.00019511016
    %v2444 = vadd.f32 %v2443, 0.008332121
    %v2445 = vmul.f32 %v2442, %v2444
    %v2446 = vadd.f32 %v2445, -0.16666654
    %v2447 = vmul.f32 %v2442, %v2446
    %v2448 = vadd.f32 %v2447, 1.0
    %v2449 = vmul.f32 %v2448, %v2433
    %vm2450 = vweird.f32 %v293
    %v2451 = vand.u32 %v2434, 3
    %vm2452 = vcmp.lt.s32.totalorder %v2451, 2
    %vm2453 = vcmp.eq.s32.totalorder %v2451, 0
    %v2454 = vxor.u32 %v2449, 2147483648
    %v2455 = vsel %vm2453, %v2441, %v2454
    %vm2456 = vcmp.eq.s32.totalorder %v2451, 2
    %v2457 = vxor.u32 %v2441, 2147483648
    %v2458 = vsel %vm2456, %v2457, %v2449
    %v2459 = vsel %vm2452, %v2455, %v2458
    %v2460 = vsel %vm2450, nan, %v2459
    %v2461 = vand.u32 2147483647, %v294
    %vm2462 = vcmp.le.f32.partialorder %v2461, 0.7853982
    %vm2463 = vcmp.lt.s32.totalorder %v294, 0
    %v2464 = vand.u32 %v294, 2139095040
    %v2465 = vshrl.u32 %v2464, 23
    %v2466 = vsub.s32 %v2465, 127
    %v2467 = vand.u32 2147483647, %v294
    %v2468 = vand.u32 %v2467, 8388607
    %v2469 = vor.u32 %v2468, 8388608
    %v2470 = vsub.s32 0, %v2469
    %v2471 = vadd.s32 %v2466, 1
    %vm2472 = vcmp.gt.s32.totalorder %v2471, 0
    %v2473 = vsel %vm2472, %v2471, 0
    %v2474 = vshrl.u32 %v2473, 5
    %v2475 = vand.u32 %v2473, 31
    %v2476 = vsub.s32 32, %v2475
    %v2477 = vshrl.u32 683565275, %v2476
    %v2478 = vshll.u32 683565275, %v2475
    %v2479 = vshrl.u32 2475754826, %v2476
    %v2480 = vor.u32 %v2478, %v2479
    %v2481 = vshll.u32 2475754826, %v2475
    %v2482 = vshrl.u32 2131351028, %v2476
    %v2483 = vor.u32 %v2481, %v2482
    %v2484 = vshll.u32 2131351028, %v2475
    %v2485 = vshrl.u32 2102212464, %v2476
    %v2486 = vor.u32 %v2484, %v2485
    %v2487 = vshll.u32 2102212464, %v2475
    %v2488 = vshrl.u32 920167782, %v2476
    %v2489 = vor.u32 %v2487, %v2488
    %v2490 = vshll.u32 920167782, %v2475
    %v2491 = vshrl.u32 1326507024, %v2476
    %v2492 = vor.u32 %v2490, %v2491
    %vm2493 = vcmp.lt.s32.totalorder %v2474, 1
    %vm2494 = vcmp.lt.s32.totalorder %v2474, 2
    %vm2495 = vcmp.lt.s32.totalorder %v2474, 3
    %vm2496 = vcmp.lt.s32.totalorder %v2474, 4
    %v2497 = vsel %vm2493, %v2477, %v2480
    %v2498 = vsel %vm2496, %v2486, 2102212464
    %v2499 = vsel %vm2495, %v2483, %v2498
    %v2500 = vsel %vm2494, %v2497, %v2499
    %v2501 = vsel %vm2493, %v2480, %v2483
    %v2502 = vsel %vm2496, %v2489, 920167782
    %v2503 = vsel %vm2495, %v2486, %v2502
    %v2504 = vsel %vm2494, %v2501, %v2503
    %v2505 = vsel %vm2493, %v2483, %v2486
    %v2506 = vsel %vm2496, %v2492, 1326507024
    %v2507 = vsel %vm2495, %v2489, %v2506
    %v2508 = vsel %vm2494, %v2505, %v2507
    %v2509 = vshll.u32 %v2469, 8
    %v2510 = vand.u32 %v2509, 65535
    %v2511 = vshrl.u32 %v2509, 16
    %v2512 = vand.u32 %v2508, 65535
    %v2513 = vshrl.u32 %v2508, 16
    %v2514 = vmul.u32 %v2510, %v2512
    %v2515 = vmul.u32 %v2510, %v2513
    %v2516 = vmul.u32 %v2511, %v2512
    %v2517 = vmul.u32 %v2511, %v2513
    %v2518 = vshll.u32 %v2515, 16
    %v2519 = vshrl.u32 %v2515, 16
    %v2520 = vshll.u32 %v2516, 16
    %v2521 = vshrl.u32 %v2516, 16
    %vm2522 = vc.u32 %v2514, %v2518
    %v2523 = vsel %vm2522, 1, 0
    %v2524 = vadd.s32 %v2514, %v2518
    %v2525 = vadd.s32 %v2517, %v2523
    %vm2526 = vc.u32 %v2524, %v2520
    %v2527 = vsel %vm2526, 1, 0
    %v2528 = vadd.s32 %v2524, %v2520
    %v2529 = vadd.s32 %v2525, %v2527
    %v2530 = vadd.s32 %v2529, %v2519
    %v2531 = vadd.s32 %v2530, %v2521
    %v2532 = vand.u32 %v2509, 65535
    %v2533 = vshrl.u32 %v2509, 16
    %v2534 = vand.u32 %v2504, 65535
    %v2535 = vshrl.u32 %v2504, 16
    %v2536 = vmul.u32 %v2532, %v2534
    %v2537 = vmul.u32 %v2532, %v2535
    %v2538 = vmul.u32 %v2533, %v2534
    %v2539 = vmul.u32 %v2533, %v2535
    %v2540 = vshll.u32 %v2537, 16
    %v2541 = vshrl.u32 %v2537, 16
    %v2542 = vshll.u32 %v2538, 16
    %v2543 = vshrl.u32 %v2538, 16
    %vm2544 = vc.u32 %v2536, %v2540
    %v2545 = vsel %vm2544, 1, 0
    %v2546 = vadd.s32 %v2536, %v2540
    %v2547 = vadd.s32 %v2539, %v2545
    %vm2548 = vc.u32 %v2546, %v2542
    %v2549 = vsel %vm2548, 1, 0
    %v2550 = vadd.s32 %v2546, %v2542
    %v2551 = vadd.s32 %v2547, %v2549
    %v2552 = vadd.s32 %v2551, %v2541
    %v2553 = vadd.s32 %v2552, %v2543
    %v2554 = vmul.u32 %v2509, %v2500
    %v2555 = vadd.s32 %v2531, %v2550
    %vm2556 = vc.u32 %v2531, %v2550
    %v2557 = vadd.s32 %v2553, 1
    %v2558 = vsel %vm2556, %v2557, %v2553
    %v2559 = vadd.s32 %v2554, %v2558
    %v2560 = vadd.s32 %v2559, 536870912
    %v2561 = vshrl.u32 %v2560, 30
    %v2562 = vshll.u32 %v2561, 30
    %v2563 = vsub.s32 %v2559, %v2562
    %vm2564 = vcmp.lt.s32.totalorder %v2563, 0
    %v2565 = vsub.s32 0, %v2563
    %v2566 = vsel %vm2564, %v2565, %v2563
    %v2567 = vclz %v2566
    %v2568 = vsub.s32 %v2567, 2
    %vm2569 = vcmp.gt.s32.totalorder 0, %v2568
    %v2570 = vsel %vm2569, 0, %v2568
    %v2571 = vsub.s32 32, %v2570
    %v2572 = vshll.u32 %v2563, %v2570
    %v2573 = vshrl.u32 %v2555, %v2571
    %v2574 = vor.u32 %v2572, %v2573
    %v2575 = vsub.s32 4294967266, %v2570
    %v2576 = vadd.s32 %v2575, 127
    %v2577 = vshll.u32 %v2576, 23
    %v2578 = vor.u32 4788187, %v2577
    %v2579 = vand.u32 2147483647, %v2578
    %v2581 = vcvt.s32.f32 %v2574
    %v2582 = vmul.f32 %v2581, %v2579
    %v2583 = vxor.u32 %v2582, 2147483648
    %v2584 = vsel %vm2463, %v2583, %v2582
    %v2585 = vsub.s32 4, %v2561
    %v2586 = vsel %vm2463, %v2585, %v2561
    %v2587 = vsel %vm2462, %v294, %v2584
    %v2588 = vsel %vm2462, 0, %v2586
    %v2589 = vmul.f32 %v2587, %v2587
    %v2590 = vmul.f32 %v2589, -0.001358992
    %v2591 = vadd.f32 %v2590, 0.041655596
    %v2592 = vmul.f32 %v2589, %v2591
    %v2593 = vadd.f32 %v2592, -0.4999988
    %v2594 = vmul.f32 %v2589, %v2593
    %v2595 = vadd.f32 1.0, %v2594
    %v2596 = vmul.f32 %v2587, %v2587
    %v2597 = vmul.f32 %v2596, -0.00019511016
    %v2598 = vadd.f32 %v2597, 0.008332121
    %v2599 = vmul.f32 %v2596, %v2598
    %v2600 = vadd.f32 %v2599, -0.16666654
    %v2601 = vmul.f32 %v2596, %v2600
    %v2602 = vadd.f32 %v2601, 1.0
    %v2603 = vmul.f32 %v2602, %v2587
    %vm2604 = vweird.f32 %v294
    %v2605 = vand.u32 %v2588, 3
    %vm2606 = vcmp.lt.s32.totalorder %v2605, 2
    %vm2607 = vcmp.eq.s32.totalorder %v2605, 0
    %v2608 = vxor.u32 %v2603, 2147483648
    %v2609 = vsel %vm2607, %v2595, %v2608
    %vm2610 = vcmp.eq.s32.totalorder %v2605, 2
    %v2611 = vxor.u32 %v2595, 2147483648
    %v2612 = vsel %vm2610, %v2611, %v2603
    %v2613 = vsel %vm2606, %v2609, %v2612
    %v2614 = vsel %vm2604, nan, %v2613
    %v2615 = vand.u32 2147483647, %v295
    %vm2616 = vcmp.le.f32.partialorder %v2615, 0.7853982
    %vm2617 = vcmp.lt.s32.totalorder %v295, 0
    %v2618 = vand.u32 %v295, 2139095040
    %v2619 = vshrl.u32 %v2618, 23
    %v2620 = vsub.s32 %v2619, 127
    %v2621 = vand.u32 2147483647, %v295
    %v2622 = vand.u32 %v2621, 8388607
    %v2623 = vor.u32 %v2622, 8388608
    %v2624 = vsub.s32 0, %v2623
    %v2625 = vadd.s32 %v2620, 1
    %vm2626 = vcmp.gt.s32.totalorder %v2625, 0
    %v2627 = vsel %vm2626, %v2625, 0
    %v2628 = vshrl.u32 %v2627, 5
    %v2629 = vand.u32 %v2627, 31
    %v2630 = vsub.s32 32, %v2629
    %v2631 = vshrl.u32 683565275, %v2630
    %v2632 = vshll.u32 683565275, %v2629
    %v2633 = vshrl.u32 2475754826, %v2630
    %v2634 = vor.u32 %v2632, %v2633
    %v2635 = vshll.u32 2475754826, %v2629
    %v2636 = vshrl.u32 2131351028, %v2630
    %v2637 = vor.u32 %v2635, %v2636
    %v2638 = vshll.u32 2131351028, %v2629
    %v2639 = vshrl.u32 2102212464, %v2630
    %v2640 = vor.u32 %v2638, %v2639
    %v2641 = vshll.u32 2102212464, %v2629
    %v2642 = vshrl.u32 920167782, %v2630
    %v2643 = vor.u32 %v2641, %v2642
    %v2644 = vshll.u32 920167782, %v2629
    %v2645 = vshrl.u32 1326507024, %v2630
    %v2646 = vor.u32 %v2644, %v2645
    %vm2647 = vcmp.lt.s32.totalorder %v2628, 1
    %vm2648 = vcmp.lt.s32.totalorder %v2628, 2
    %vm2649 = vcmp.lt.s32.totalorder %v2628, 3
    %vm2650 = vcmp.lt.s32.totalorder %v2628, 4
    %v2651 = vsel %vm2647, %v2631, %v2634
    %v2652 = vsel %vm2650, %v2640, 2102212464
    %v2653 = vsel %vm2649, %v2637, %v2652
    %v2654 = vsel %vm2648, %v2651, %v2653
    %v2655 = vsel %vm2647, %v2634, %v2637
    %v2656 = vsel %vm2650, %v2643, 920167782
    %v2657 = vsel %vm2649, %v2640, %v2656
    %v2658 = vsel %vm2648, %v2655, %v2657
    %v2659 = vsel %vm2647, %v2637, %v2640
    %v2660 = vsel %vm2650, %v2646, 1326507024
    %v2661 = vsel %vm2649, %v2643, %v2660
    %v2662 = vsel %vm2648, %v2659, %v2661
    %v2663 = vshll.u32 %v2623, 8
    %v2664 = vand.u32 %v2663, 65535
    %v2665 = vshrl.u32 %v2663, 16
    %v2666 = vand.u32 %v2662, 65535
    %v2667 = vshrl.u32 %v2662, 16
    %v2668 = vmul.u32 %v2664, %v2666
    %v2669 = vmul.u32 %v2664, %v2667
    %v2670 = vmul.u32 %v2665, %v2666
    %v2671 = vmul.u32 %v2665, %v2667
    %v2672 = vshll.u32 %v2669, 16
    %v2673 = vshrl.u32 %v2669, 16
    %v2674 = vshll.u32 %v2670, 16
    %v2675 = vshrl.u32 %v2670, 16
    %vm2676 = vc.u32 %v2668, %v2672
    %v2677 = vsel %vm2676, 1, 0
    %v2678 = vadd.s32 %v2668, %v2672
    %v2679 = vadd.s32 %v2671, %v2677
    %vm2680 = vc.u32 %v2678, %v2674
    %v2681 = vsel %vm2680, 1, 0
    %v2682 = vadd.s32 %v2678, %v2674
    %v2683 = vadd.s32 %v2679, %v2681
    %v2684 = vadd.s32 %v2683, %v2673
    %v2685 = vadd.s32 %v2684, %v2675
    %v2686 = vand.u32 %v2663, 65535
    %v2687 = vshrl.u32 %v2663, 16
    %v2688 = vand.u32 %v2658, 65535
    %v2689 = vshrl.u32 %v2658, 16
    %v2690 = vmul.u32 %v2686, %v2688
    %v2691 = vmul.u32 %v2686, %v2689
    %v2692 = vmul.u32 %v2687, %v2688
    %v2693 = vmul.u32 %v2687, %v2689
    %v2694 = vshll.u32 %v2691, 16
    %v2695 = vshrl.u32 %v2691, 16
    %v2696 = vshll.u32 %v2692, 16
    %v2697 = vshrl.u32 %v2692, 16
    %vm2698 = vc.u32 %v2690, %v2694
    %v2699 = vsel %vm2698, 1, 0
    %v2700 = vadd.s32 %v2690, %v2694
    %v2701 = vadd.s32 %v2693, %v2699
    %vm2702 = vc.u32 %v2700, %v2696
    %v2703 = vsel %vm2702, 1, 0
    %v2704 = vadd.s32 %v2700, %v2696
    %v2705 = vadd.s32 %v2701, %v2703
    %v2706 = vadd.s32 %v2705, %v2695
    %v2707 = vadd.s32 %v2706, %v2697
    %v2708 = vmul.u32 %v2663, %v2654
    %v2709 = vadd.s32 %v2685, %v2704
    %vm2710 = vc.u32 %v2685, %v2704
    %v2711 = vadd.s32 %v2707, 1
    %v2712 = vsel %vm2710, %v2711, %v2707
    %v2713 = vadd.s32 %v2708, %v2712
    %v2714 = vadd.s32 %v2713, 536870912
    %v2715 = vshrl.u32 %v2714, 30
    %v2716 = vshll.u32 %v2715, 30
    %v2717 = vsub.s32 %v2713, %v2716
    %vm2718 = vcmp.lt.s32.totalorder %v2717, 0
    %v2719 = vsub.s32 0, %v2717
    %v2720 = vsel %vm2718, %v2719, %v2717
    %v2721 = vclz %v2720
    %v2722 = vsub.s32 %v2721, 2
    %vm2723 = vcmp.gt.s32.totalorder 0, %v2722
    %v2724 = vsel %vm2723, 0, %v2722
    %v2725 = vsub.s32 32, %v2724
    %v2726 = vshll.u32 %v2717, %v2724
    %v2727 = vshrl.u32 %v2709, %v2725
    %v2728 = vor.u32 %v2726, %v2727
    %v2729 = vsub.s32 4294967266, %v2724
    %v2730 = vadd.s32 %v2729, 127
    %v2731 = vshll.u32 %v2730, 23
    %v2732 = vor.u32 4788187, %v2731
    %v2733 = vand.u32 2147483647, %v2732
    %v2735 = vcvt.s32.f32 %v2728
    %v2736 = vmul.f32 %v2735, %v2733
    %v2737 = vxor.u32 %v2736, 2147483648
    %v2738 = vsel %vm2617, %v2737, %v2736
    %v2739 = vsub.s32 4, %v2715
    %v2740 = vsel %vm2617, %v2739, %v2715
    %v2741 = vsel %vm2616, %v295, %v2738
    %v2742 = vsel %vm2616, 0, %v2740
    %v2743 = vmul.f32 %v2741, %v2741
    %v2744 = vmul.f32 %v2743, -0.001358992
    %v2745 = vadd.f32 %v2744, 0.041655596
    %v2746 = vmul.f32 %v2743, %v2745
    %v2747 = vadd.f32 %v2746, -0.4999988
    %v2748 = vmul.f32 %v2743, %v2747
    %v2749 = vadd.f32 1.0, %v2748
    %v2750 = vmul.f32 %v2741, %v2741
    %v2751 = vmul.f32 %v2750, -0.00019511016
    %v2752 = vadd.f32 %v2751, 0.008332121
    %v2753 = vmul.f32 %v2750, %v2752
    %v2754 = vadd.f32 %v2753, -0.16666654
    %v2755 = vmul.f32 %v2750, %v2754
    %v2756 = vadd.f32 %v2755, 1.0
    %v2757 = vmul.f32 %v2756, %v2741
    %vm2758 = vweird.f32 %v295
    %v2759 = vand.u32 %v2742, 3
    %vm2760 = vcmp.lt.s32.totalorder %v2759, 2
    %vm2761 = vcmp.eq.s32.totalorder %v2759, 0
    %v2762 = vxor.u32 %v2757, 2147483648
    %v2763 = vsel %vm2761, %v2749, %v2762
    %vm2764 = vcmp.eq.s32.totalorder %v2759, 2
    %v2765 = vxor.u32 %v2749, 2147483648
    %v2766 = vsel %vm2764, %v2765, %v2757
    %v2767 = vsel %vm2760, %v2763, %v2766
    %v2768 = vsel %vm2758, nan, %v2767
    %v2769 = vsel %vm296, %v451, %v1690
    %v2770 = vsel %vm296, %v606, %v1844
    %v2771 = vsel %vm296, %v761, %v1998
    %v2772 = vsel %vm296, %v916, %v2152
    %v2773 = vsel %vm296, %v1071, %v2306
    %v2774 = vsel %vm296, %v1226, %v2460
    %v2775 = vsel %vm296, %v1381, %v2614
    %v2776 = vsel %vm296, %v1536, %v2768
    %vm2777 = vcmp.eq.s32.totalorder %v29, 0
    %v2778 = vsel %vm2777, %v276, %v2769
    %v2779 = vsel %vm2777, %v277, %v2770
    %v2780 = vsel %vm2777, %v278, %v2771
    %v2781 = vsel %vm2777, %v279, %v2772
    %v2782 = vsel %vm2777, %v280, %v2773
    %v2783 = vsel %vm2777, %v281, %v2774
    %v2784 = vsel %vm2777, %v282, %v2775
    %v2785 = vsel %vm2777, %v283, %v2776
    %vm2786 = vcmask 1031168
    %2787 = vst.msk [vmem:[#allocation2] sm:$0xff] %vm2786, %v2778
    %2788 = vst.msk [vmem:[#allocation2 + $0x8] sm:$0xff] %vm2786, %v2779
    %2789 = vst.msk [vmem:[#allocation2 + $0x10] sm:$0xff] %vm2786, %v2780
    %2790 = vst.msk [vmem:[#allocation2 + $0x18] sm:$0xff] %vm2786, %v2781
    %2791 = vst.msk [vmem:[#allocation2 + $0x20] sm:$0xff] %vm2786, %v2782
    %2792 = vst.msk [vmem:[#allocation2 + $0x28] sm:$0xff] %vm2786, %v2783
    %2793 = vst.msk [vmem:[#allocation2 + $0x30] sm:$0xff] %vm2786, %v2784
    %2794 = vst.msk [vmem:[#allocation2 + $0x38] sm:$0xff] %vm2786, %v2785
    // Predicated region
    $region18: #{tpu_custom_call.1} parent=1 // pred_check
      _
    $region19: #{tpu_custom_call.1} parent=1 // pred_check_branch
      %2796 = sbr.rel (0) target = $region21
    $region20: #{tpu_custom_call.1} parent=1 // pred_region
      %2798 = vsyncadd [#allocation3], 0
      %s2799 = sshll.u32 [#allocation2], 4
      %s2800 = int_to_ptr.vmem [resolvable:$true] %s2799
      %s2801 = sshll.u32 %s4, 4
      %s2802 = int_to_ptr.hbm [resolvable:$true] %s2801
      %2807 = dma.vmem_to_hbm [thread:$0]  %s2800, 1024, %s2802, [#allocation3], 128, 128, 8
    $region21: #{tpu_custom_call.1} parent=1 // pred_fallthru
      _
    // Predicated region
    $region22: #{tpu_custom_call.1} parent=1 // pred_check
      _
    $region23: #{tpu_custom_call.1} parent=1 // pred_check_branch
      %2809 = sbr.rel (0) target = $region25
    $region24: #{tpu_custom_call.1} parent=1 // pred_region
      %2811 = dma.done [#allocation3], 1024
    $region25: #{tpu_custom_call.1} parent=1 // pred_fallthru
      _
    %2812 = vsyncpa [#allocation3], 1

</llo_original>
